<compile_context>
chip_gen: v7x
topology: tpu7x:2x2x1
jax: 0.10.0
libtpu: 0.0.40
codegen_flags: <defaults>
</compile_context>

<pallas_src>
import functools
import operator

import jax
import jax.numpy as jnp
from jax.experimental import pallas as pl
from jax.experimental.pallas import tpu as pltpu


def _round_up(x, m):
    return ((x + m - 1) // m) * m


def _pad2(a, rows, cols):
    return jnp.pad(a, ((0, rows - a.shape[0]), (0, cols - a.shape[1])))


def _actor_dense_kernel(ma_ref, x_ref, w1_ref, b1_ref, w2_ref, b2_ref,
                        w3_ref, b3_ref, o_ref):
    # l1 + relu  (bf16 MXU matmul, f32 accumulate / epilogue)
    x = x_ref[...].astype(jnp.bfloat16)
    h1 = jnp.dot(x, w1_ref[...], preferred_element_type=jnp.float32)
    h1 = jnp.maximum(h1 + b1_ref[...], 0.0)
    # l2 + relu
    h2 = jnp.dot(h1.astype(jnp.bfloat16), w2_ref[...],
                 preferred_element_type=jnp.float32)
    h2 = jnp.maximum(h2 + b2_ref[...], 0.0)
    # l3 + max_action * tanh  (tanh rides the EUP slot under the MXU)
    h3 = jnp.dot(h2.astype(jnp.bfloat16), w3_ref[...],
                 preferred_element_type=jnp.float32) + b3_ref[...]
    o_ref[...] = (ma_ref[0, 0] * jnp.tanh(h3)).astype(o_ref.dtype)


def _pick_batch_tile(batch):
    """Batch tile: cap 1024 rows; for batch > 256 force >= 2 grid steps so the
    batch-parallel axis can shard across both TensorCores on v7x."""
    batch = max(int(batch), 1)
    if batch <= 256:
        return _round_up(batch, 8)            # single step; latency-bound regime
    return min(1024, _round_up(pl.cdiv(batch, 2), 8))


def pad_and_cast_params(params, state_dim_flat):
    """Zero-pad output widths to lane-aligned (x128) sizes; weights -> bf16, biases f32.
    The contraction dim of w1 stays at the true state_dim_flat (x is never padded)."""
    k1 = state_dim_flat
    n1 = _round_up(params["w1"].shape[1], 128)   # 400 -> 512
    n2 = _round_up(params["w2"].shape[1], 128)   # 300 -> 384
    n3 = _round_up(params["w3"].shape[1], 128)   # action_dim -> 128
    return {
        "w1": _pad2(params["w1"], k1, n1).astype(jnp.bfloat16),
        "b1": _pad2(params["b1"], 1, n1),
        "w2": _pad2(params["w2"], n1, n2).astype(jnp.bfloat16),
        "b2": _pad2(params["b2"], 1, n2),
        "w3": _pad2(params["w3"], n2, n3).astype(jnp.bfloat16),
        "b3": _pad2(params["b3"], 1, n3),
    }


def actor_dense_forward(x, pparams, max_action, action_dim):
    """x: [batch, state_dim_flat] (f32 or bf16, unpadded). pparams: padded params."""
    batch, state_flat = x.shape
    w1, b1 = pparams["w1"], pparams["b1"]
    w2, b2 = pparams["w2"], pparams["b2"]
    w3, b3 = pparams["w3"], pparams["b3"]
    k1, n1 = w1.shape
    n2 = w2.shape[1]
    n3 = w3.shape[1]
    assert k1 == state_flat, "w1 contraction dim must equal flattened state dim"

    tb = _pick_batch_tile(batch)
    grid_b = pl.cdiv(batch, tb)

    # max_action as a (1,1) SMEM scalar: no recompile per value, jit-safe.
    ma = jnp.full((1, 1), max_action, jnp.float32)

    out = pl.pallas_call(
        _actor_dense_kernel,
        out_shape=jax.ShapeDtypeStruct((batch, n3), jnp.float32),
        grid=(grid_b,),
        in_specs=[
            pl.BlockSpec(memory_space=pltpu.MemorySpace.SMEM),   # max_action scalar
            pl.BlockSpec((tb, state_flat), lambda i: (i, 0)),    # x: tiled over batch
            pl.BlockSpec((k1, n1), lambda i: (0, 0)),            # weights/biases stay
            pl.BlockSpec((1, n1), lambda i: (0, 0)),             #   VMEM-resident
            pl.BlockSpec((n1, n2), lambda i: (0, 0)),            #   (block index never
            pl.BlockSpec((1, n2), lambda i: (0, 0)),             #    changes)
            pl.BlockSpec((n2, n3), lambda i: (0, 0)),
            pl.BlockSpec((1, n3), lambda i: (0, 0)),
        ],
        out_specs=pl.BlockSpec((tb, n3), lambda i: (i, 0)),
        compiler_params=pltpu.CompilerParams(
            dimension_semantics=("parallel",),
            vmem_limit_bytes=48 * 1024 * 1024),
    )(ma, x, w1, b1, w2, b2, w3, b3)

    return out[:, :action_dim]


def init_actor_dense_params(key, state_dim_flat, action_dim):
    """Deterministic init mimicking torch nn.Linear default (uniform +-1/sqrt(fan_in))."""
    dims = [(state_dim_flat, 400), (400, 300), (300, action_dim)]
    params = {}
    for i, (fan_in, fan_out) in enumerate(dims, start=1):
        key, kw, kb = jax.random.split(key, 3)
        bound = 1.0 / jnp.sqrt(float(fan_in))
        # stored as (in, out) so the kernel does x @ W + b
        params[f"w{i}"] = jax.random.uniform(
            kw, (fan_in, fan_out), jnp.float32, -bound, bound)
        params[f"b{i}"] = jax.random.uniform(
            kb, (1, fan_out), jnp.float32, -bound, bound)
    return params


def _ref_bf16(x, params, max_action):
    """Mirror the kernel's bf16-weight / f32-accumulate math in plain JAX."""
    w1b = params["w1"].astype(jnp.bfloat16)
    w2b = params["w2"].astype(jnp.bfloat16)
    w3b = params["w3"].astype(jnp.bfloat16)
    h = jnp.maximum(jnp.dot(x.astype(jnp.bfloat16), w1b,
                            preferred_element_type=jnp.float32) + params["b1"], 0.0)
    h = jnp.maximum(jnp.dot(h.astype(jnp.bfloat16), w2b,
                            preferred_element_type=jnp.float32) + params["b2"], 0.0)
    return max_action * jnp.tanh(
        jnp.dot(h.astype(jnp.bfloat16), w3b,
                preferred_element_type=jnp.float32) + params["b3"])


def _ref_f32(x, params, max_action):
    """Exact PyTorch f32 semantics."""
    h = jnp.maximum(x @ params["w1"] + params["b1"], 0.0)
    h = jnp.maximum(h @ params["w2"] + params["b2"], 0.0)
    return max_action * jnp.tanh(h @ params["w3"] + params["b3"])


if __name__ == "__main__":
    # Small shapes consistent with the module: state_dim = (4, 16, 16) -> 1024 flat.
    batch = 2
    state_dim = (4, 16, 16)
    action_dim = 2
    max_action = 1.0

    state_dim_flat = functools.reduce(operator.mul, state_dim, 1)

    key = jax.random.PRNGKey(0)
    key, kx = jax.random.split(key)
    x_nchw = jax.random.normal(kx, (batch,) + state_dim, jnp.float32)
    x_flat = x_nchw.reshape(batch, state_dim_flat)   # flatten like torch .view

    params = init_actor_dense_params(key, state_dim_flat, action_dim)
    pparams = pad_and_cast_params(params, state_dim_flat)

    out = actor_dense_forward(x_flat, pparams, max_action, action_dim)
    out = jax.block_until_ready(out)
    assert out.shape == (batch, action_dim)

    # Reference 1: bf16-weight / f32-accumulate mirror of the kernel math.
    ref_b = _ref_bf16(x_flat, params, max_action)
    assert jnp.allclose(out, ref_b, atol=2e-3, rtol=2e-3), \
        float(jnp.max(jnp.abs(out - ref_b)))

    # Reference 2: full-precision f32 forward (exact PyTorch semantics); loose
    # tolerance only accounts for bf16 weight/activation quantization.
    ref_f = _ref_f32(x_flat, params, max_action)
    assert jnp.allclose(out, ref_f, atol=5e-2, rtol=5e-2), \
        float(jnp.max(jnp.abs(out - ref_f)))

    # Second check: non-divisible batch exercises the multi-step "parallel" grid
    # and the masked partial final block (no wrapper-side padding of x anywhere).
    batch2 = 260
    key, kx2 = jax.random.split(key)
    x2 = jax.random.normal(kx2, (batch2, state_dim_flat), jnp.float32)
    out2 = jax.block_until_ready(
        actor_dense_forward(x2, pparams, max_action, action_dim))
    assert out2.shape == (batch2, action_dim)
    ref2 = _ref_bf16(x2, params, max_action)
    assert jnp.allclose(out2, ref2, atol=2e-3, rtol=2e-3), \
        float(jnp.max(jnp.abs(out2 - ref2)))

    print("KERNEL_OK")
</pallas_src>

<mosaic_0001>
module attributes {stable_mosaic.version = 11 : i64} {
  func.func @_actor_dense_kernel(%arg0: i32, %arg1: memref<1x1xf32, #tpu.memory_space<smem>>, %arg2: memref<8x1024xf32, #tpu.memory_space<vmem>>, %arg3: memref<1024x512xbf16, #tpu.memory_space<vmem>>, %arg4: memref<1x512xf32, #tpu.memory_space<vmem>>, %arg5: memref<512x384xbf16, #tpu.memory_space<vmem>>, %arg6: memref<1x384xf32, #tpu.memory_space<vmem>>, %arg7: memref<384x128xbf16, #tpu.memory_space<vmem>>, %arg8: memref<1x128xf32, #tpu.memory_space<vmem>>, %arg9: memref<8x128xf32, #tpu.memory_space<vmem>>) attributes {dimension_semantics = [#tpu.dimension_semantics<parallel>], iteration_bounds = array<i64: 1>, scalar_prefetch = 0 : i64, scratch_operands = 0 : i64, tpu.core_type = #tpu.core_type<tc>, window_params = [{transform_indices = @transform_0, window_bounds = array<i64: 1, 1>}, {transform_indices = @transform_1, window_bounds = array<i64: 8, 1024>}, {pipeline_mode = #tpu.pipeline_mode<synchronous>, transform_indices = @transform_2, window_bounds = array<i64: 1024, 512>}, {pipeline_mode = #tpu.pipeline_mode<synchronous>, transform_indices = @transform_3, window_bounds = array<i64: 1, 512>}, {pipeline_mode = #tpu.pipeline_mode<synchronous>, transform_indices = @transform_4, window_bounds = array<i64: 512, 384>}, {pipeline_mode = #tpu.pipeline_mode<synchronous>, transform_indices = @transform_5, window_bounds = array<i64: 1, 384>}, {pipeline_mode = #tpu.pipeline_mode<synchronous>, transform_indices = @transform_6, window_bounds = array<i64: 384, 128>}, {pipeline_mode = #tpu.pipeline_mode<synchronous>, transform_indices = @transform_7, window_bounds = array<i64: 1, 128>}, {transform_indices = @transform_8, window_bounds = array<i64: 8, 128>}]} {
    %c0 = arith.constant 0 : index
    %c0_0 = arith.constant 0 : index
    %0 = vector.load %arg2[%c0, %c0_0] : memref<8x1024xf32, #tpu.memory_space<vmem>>, vector<8x1024xf32>
    %1 = arith.truncf %0 : vector<8x1024xf32> to vector<8x1024xbf16>
    %c0_1 = arith.constant 0 : index
    %c0_2 = arith.constant 0 : index
    %2 = vector.load %arg3[%c0_1, %c0_2] : memref<1024x512xbf16, #tpu.memory_space<vmem>>, vector<1024x512xbf16>
    %cst = arith.constant dense<0.000000e+00> : vector<8x512xf32>
    %3 = tpu.matmul %1, %2, %cst {dimension_numbers = #tpu.dot_dimension_numbers<[1], [0], [0], [1], [0, 0, 1, 1], [], []>} : vector<8x1024xbf16>, vector<1024x512xbf16>, vector<8x512xf32> -> vector<8x512xf32>
    %c0_3 = arith.constant 0 : index
    %c0_4 = arith.constant 0 : index
    %4 = vector.load %arg4[%c0_3, %c0_4] : memref<1x512xf32, #tpu.memory_space<vmem>>, vector<1x512xf32>
    %5 = vector.broadcast %4 : vector<1x512xf32> to vector<8x512xf32>
    %6 = arith.addf %3, %5 : vector<8x512xf32>
    %cst_5 = arith.constant 0.000000e+00 : f32
    %7 = vector.broadcast %cst_5 : f32 to vector<8x512xf32>
    %8 = arith.maximumf %6, %7 : vector<8x512xf32>
    %9 = arith.truncf %8 : vector<8x512xf32> to vector<8x512xbf16>
    %c0_6 = arith.constant 0 : index
    %c0_7 = arith.constant 0 : index
    %10 = vector.load %arg5[%c0_6, %c0_7] : memref<512x384xbf16, #tpu.memory_space<vmem>>, vector<512x384xbf16>
    %cst_8 = arith.constant dense<0.000000e+00> : vector<8x384xf32>
    %11 = tpu.matmul %9, %10, %cst_8 {dimension_numbers = #tpu.dot_dimension_numbers<[1], [0], [0], [1], [0, 0, 1, 1], [], []>} : vector<8x512xbf16>, vector<512x384xbf16>, vector<8x384xf32> -> vector<8x384xf32>
    %c0_9 = arith.constant 0 : index
    %c0_10 = arith.constant 0 : index
    %12 = vector.load %arg6[%c0_9, %c0_10] : memref<1x384xf32, #tpu.memory_space<vmem>>, vector<1x384xf32>
    %13 = vector.broadcast %12 : vector<1x384xf32> to vector<8x384xf32>
    %14 = arith.addf %11, %13 : vector<8x384xf32>
    %cst_11 = arith.constant 0.000000e+00 : f32
    %15 = vector.broadcast %cst_11 : f32 to vector<8x384xf32>
    %16 = arith.maximumf %14, %15 : vector<8x384xf32>
    %17 = arith.truncf %16 : vector<8x384xf32> to vector<8x384xbf16>
    %c0_12 = arith.constant 0 : index
    %c0_13 = arith.constant 0 : index
    %18 = vector.load %arg7[%c0_12, %c0_13] : memref<384x128xbf16, #tpu.memory_space<vmem>>, vector<384x128xbf16>
    %cst_14 = arith.constant dense<0.000000e+00> : vector<8x128xf32>
    %19 = tpu.matmul %17, %18, %cst_14 {dimension_numbers = #tpu.dot_dimension_numbers<[1], [0], [0], [1], [0, 0, 1, 1], [], []>} : vector<8x384xbf16>, vector<384x128xbf16>, vector<8x128xf32> -> vector<8x128xf32>
    %c0_15 = arith.constant 0 : index
    %c0_16 = arith.constant 0 : index
    %20 = vector.load %arg8[%c0_15, %c0_16] : memref<1x128xf32, #tpu.memory_space<vmem>>, vector<1x128xf32>
    %21 = vector.broadcast %20 : vector<1x128xf32> to vector<8x128xf32>
    %22 = arith.addf %19, %21 : vector<8x128xf32>
    %c0_17 = arith.constant 0 : index
    %c0_18 = arith.constant 0 : index
    %23 = memref.load %arg1[%c0_17, %c0_18] : memref<1x1xf32, #tpu.memory_space<smem>>
    %24 = math.tanh %22 : vector<8x128xf32>
    %25 = vector.broadcast %23 : f32 to vector<8x128xf32>
    %26 = arith.mulf %25, %24 : vector<8x128xf32>
    %c0_19 = arith.constant 0 : index
    %c0_20 = arith.constant 0 : index
    %27 = vector.load %arg9[%c0_19, %c0_20] : memref<8x128xf32, #tpu.memory_space<vmem>>, vector<8x128xf32>
    tpu.vector_store %arg9[%c0_19, %c0_20], %26 {strides = array<i32>} : memref<8x128xf32, #tpu.memory_space<vmem>>, vector<8x128xf32>,
    return
  }
  func.func @transform_0(%arg0: i32) -> (i32, i32) {
    %c0_i32 = arith.constant 0 : i32
    %c0_i32_0 = arith.constant 0 : i32
    %c0_i32_1 = arith.constant 0 : i32
    return %c0_i32, %c0_i32_0 : i32, i32
  }
  func.func @transform_1(%arg0: i32) -> (i32, i32) {
    %c0_i32 = arith.constant 0 : i32
    %c0_i32_0 = arith.constant 0 : i32
    return %arg0, %c0_i32 : i32, i32
  }
  func.func @transform_2(%arg0: i32) -> (i32, i32) {
    %c0_i32 = arith.constant 0 : i32
    %c0_i32_0 = arith.constant 0 : i32
    %c0_i32_1 = arith.constant 0 : i32
    return %c0_i32, %c0_i32_0 : i32, i32
  }
  func.func @transform_3(%arg0: i32) -> (i32, i32) {
    %c0_i32 = arith.constant 0 : i32
    %c0_i32_0 = arith.constant 0 : i32
    %c0_i32_1 = arith.constant 0 : i32
    return %c0_i32, %c0_i32_0 : i32, i32
  }
  func.func @transform_4(%arg0: i32) -> (i32, i32) {
    %c0_i32 = arith.constant 0 : i32
    %c0_i32_0 = arith.constant 0 : i32
    %c0_i32_1 = arith.constant 0 : i32
    return %c0_i32, %c0_i32_0 : i32, i32
  }
  func.func @transform_5(%arg0: i32) -> (i32, i32) {
    %c0_i32 = arith.constant 0 : i32
    %c0_i32_0 = arith.constant 0 : i32
    %c0_i32_1 = arith.constant 0 : i32
    return %c0_i32, %c0_i32_0 : i32, i32
  }
  func.func @transform_6(%arg0: i32) -> (i32, i32) {
    %c0_i32 = arith.constant 0 : i32
    %c0_i32_0 = arith.constant 0 : i32
    %c0_i32_1 = arith.constant 0 : i32
    return %c0_i32, %c0_i32_0 : i32, i32
  }
  func.func @transform_7(%arg0: i32) -> (i32, i32) {
    %c0_i32 = arith.constant 0 : i32
    %c0_i32_0 = arith.constant 0 : i32
    %c0_i32_1 = arith.constant 0 : i32
    return %c0_i32, %c0_i32_0 : i32, i32
  }
  func.func @transform_8(%arg0: i32) -> (i32, i32) {
    %c0_i32 = arith.constant 0 : i32
    %c0_i32_0 = arith.constant 0 : i32
    return %arg0, %c0_i32 : i32, i32
  }
}

</mosaic_0001>

<llo_original>
// kernel: tpu_custom_call.1
$region0: #{tpu_custom_call.1}
  #allocation0 [shape = 'u32[]', space=smem, size = 0x4, offset = 0x4, fixed_abs, tag = 'smem constant byte address 0x4 - core index']
  #allocation1 [shape = 'u32[144,128]{1,0:T(1,128)}', space=vmem, size = 0x12000, scoped, tag = 'internal scratch']
  #allocation2 [shape = 'f32[1,1]{1,0:T(1,128)S(6)}', space=smem, size = 0x200, scoped, tag = 'scoped memory for tpu_custom_call.1']
  %s0 = inlined_call_operand.<no memory space> [shape: f32[1,1], index: 0, kind: input, shape index: {}]
  %s1 = inlined_call_operand.hbm [shape: f32[2,1024], index: 1, kind: input, shape index: {}]
  %s2 = inlined_call_operand.hbm [shape: bf16[1024,512], index: 2, kind: input, shape index: {}]
  %s3 = inlined_call_operand.vmem [shape: f32[1,512], index: 3, kind: input, shape index: {}]
  %s4 = inlined_call_operand.hbm [shape: bf16[512,384], index: 4, kind: input, shape index: {}]
  %s5 = inlined_call_operand.vmem [shape: f32[1,384], index: 5, kind: input, shape index: {}]
  %s6 = inlined_call_operand.hbm [shape: bf16[384,128], index: 6, kind: input, shape index: {}]
  %s7 = inlined_call_operand.vmem [shape: f32[1,128], index: 7, kind: input, shape index: {}]
  %s8 = inlined_call_operand.hbm [shape: f32[2,128], index: 8, kind: output, shape index: {}]
  %s9 = sld [smem:[#allocation0]]
  $region58: #{tpu_custom_call.1} parent=0
    _
  %s11 = ssub.s32 1, %s9
  %s12 = scalar_select 0, %s11, %s9
  %13 = sst [smem:[#allocation2]] %s0
  $region1: #{tpu_custom_call.1} parent=0
    #allocation3 [shape = 'u8[32768]{0}', space=vmem, size = 0x8000, scoped, tag = 'input window, operand 1, single buffered']
    #allocation4 [shape = 's32[1]{0}', space=sflag, size = 0x4, scoped, tag = 'scoped memory for tpu_custom_call.1']
    #allocation5 [shape = 's32[1]{0}', space=sflag, size = 0x4, scoped, tag = 'scoped memory for tpu_custom_call.1']
    #allocation6 [shape = 'u8[1048576]{0}', space=vmem, size = 0x100000, scoped, tag = 'input window, operand 2, single buffered']
    #allocation7 [shape = 's32[1]{0}', space=sflag, size = 0x4, scoped, tag = 'scoped memory for tpu_custom_call.1']
    #allocation8 [shape = 'u8[393216]{0}', space=vmem, size = 0x60000, scoped, tag = 'input window, operand 4, single buffered']
    #allocation9 [shape = 'u8[98304]{0}', space=vmem, size = 0x18000, scoped, tag = 'input window, operand 6, single buffered']
    #allocation10 [shape = 's32[1]{0}', space=sflag, size = 0x4, scoped, tag = 'scoped memory for tpu_custom_call.1']
    #allocation11 [shape = 'u8[4096]{0}', space=vmem, size = 0x1000, scoped, tag = 'output window, operand 0, single buffered']
    %14 = vsyncpa [#allocation4], 0
    %15 = vsyncpa [#allocation7], 0
    %16 = vsyncpa [#allocation10], 0
    %17 = vsyncpa [#allocation5], 0
    // Predicated region
    $region2: #{tpu_custom_call.1} parent=1 // pred_check
      _
    $region3: #{tpu_custom_call.1} parent=1 // pred_check_branch
      %19 = sbr.rel (0) target = $region5
    $region4: #{tpu_custom_call.1} parent=1 // pred_region
      _
    $region5: #{tpu_custom_call.1} parent=1 // pred_fallthru
      _
    // Predicated region
    $region6: #{tpu_custom_call.1} parent=1 // pred_check
      _
    $region7: #{tpu_custom_call.1} parent=1 // pred_check_branch
      %21 = sbr.rel (0) target = $region9
    $region8: #{tpu_custom_call.1} parent=1 // pred_region
      %s23 = ssub.s32 1024, 256
      %24 = vsyncadd [#allocation4], %s23
      %s25 = sshll.u32 [#allocation3], 4
      %s26 = int_to_ptr.vmem [resolvable:$true] %s25
      %31 = dma.hbm_to_vmem [thread:$0]  %s1, 256, %s26, [#allocation4], 256, 256, 16
    $region9: #{tpu_custom_call.1} parent=1 // pred_fallthru
      _
    // Predicated region
    $region10: #{tpu_custom_call.1} parent=1 // pred_check
      _
    $region11: #{tpu_custom_call.1} parent=1 // pred_check_branch
      %33 = sbr.rel (0) target = $region13
    $region12: #{tpu_custom_call.1} parent=1 // pred_region
      %s35 = ssub.s32 32768, 32768
      %36 = vsyncadd [#allocation7], %s35
      %s37 = sshll.u32 [#allocation6], 4
      %s38 = int_to_ptr.vmem [resolvable:$true] %s37
      %43 = dma.hbm_to_vmem [thread:$0]  %s2, 32768, %s38, [#allocation7], 256, 256, 16
    $region13: #{tpu_custom_call.1} parent=1 // pred_fallthru
      _
    // Predicated region
    $region14: #{tpu_custom_call.1} parent=1 // pred_check
      _
    $region15: #{tpu_custom_call.1} parent=1 // pred_check_branch
      %45 = sbr.rel (0) target = $region17
    $region16: #{tpu_custom_call.1} parent=1 // pred_region
      _
    $region17: #{tpu_custom_call.1} parent=1 // pred_fallthru
      _
    // Predicated region
    $region18: #{tpu_custom_call.1} parent=1 // pred_check
      _
    $region19: #{tpu_custom_call.1} parent=1 // pred_check_branch
      %47 = sbr.rel (0) target = $region21
    $region20: #{tpu_custom_call.1} parent=1 // pred_region
      %s49 = ssub.s32 12288, 12288
      %50 = vsyncadd [#allocation7], %s49
      %s51 = sshll.u32 [#allocation8], 4
      %s52 = int_to_ptr.vmem [resolvable:$true] %s51
      %57 = dma.hbm_to_vmem [thread:$0]  %s4, 12288, %s52, [#allocation7], 192, 192, 12
    $region21: #{tpu_custom_call.1} parent=1 // pred_fallthru
      _
    // Predicated region
    $region22: #{tpu_custom_call.1} parent=1 // pred_check
      _
    $region23: #{tpu_custom_call.1} parent=1 // pred_check_branch
      %59 = sbr.rel (0) target = $region25
    $region24: #{tpu_custom_call.1} parent=1 // pred_region
      _
    $region25: #{tpu_custom_call.1} parent=1 // pred_fallthru
      _
    // Predicated region
    $region26: #{tpu_custom_call.1} parent=1 // pred_check
      _
    $region27: #{tpu_custom_call.1} parent=1 // pred_check_branch
      %61 = sbr.rel (0) target = $region29
    $region28: #{tpu_custom_call.1} parent=1 // pred_region
      %s63 = ssub.s32 3072, 3072
      %64 = vsyncadd [#allocation10], %s63
      %s65 = sshll.u32 [#allocation9], 4
      %s66 = int_to_ptr.vmem [resolvable:$true] %s65
      %71 = dma.hbm_to_vmem [thread:$0]  %s6, 3072, %s66, [#allocation10], 64, 64, 4
    $region29: #{tpu_custom_call.1} parent=1 // pred_fallthru
      _
    // Predicated region
    $region30: #{tpu_custom_call.1} parent=1 // pred_check
      _
    $region31: #{tpu_custom_call.1} parent=1 // pred_check_branch
      %73 = sbr.rel (0) target = $region33
    $region32: #{tpu_custom_call.1} parent=1 // pred_region
      _
    $region33: #{tpu_custom_call.1} parent=1 // pred_fallthru
      _
    // Predicated region
    $region34: #{tpu_custom_call.1} parent=1 // pred_check
      _
    $region35: #{tpu_custom_call.1} parent=1 // pred_check_branch
      %75 = sbr.rel (0) target = $region37
    $region36: #{tpu_custom_call.1} parent=1 // pred_region
      %76 = dma.done [#allocation4], 1024
    $region37: #{tpu_custom_call.1} parent=1 // pred_fallthru
      _
    // Predicated region
    $region38: #{tpu_custom_call.1} parent=1 // pred_check
      _
    $region39: #{tpu_custom_call.1} parent=1 // pred_check_branch
      %78 = sbr.rel (0) target = $region41
    $region40: #{tpu_custom_call.1} parent=1 // pred_region
      %79 = dma.done [#allocation7], 32768
    $region41: #{tpu_custom_call.1} parent=1 // pred_fallthru
      _
    // Predicated region
    $region42: #{tpu_custom_call.1} parent=1 // pred_check
      _
    $region43: #{tpu_custom_call.1} parent=1 // pred_check_branch
      %81 = sbr.rel (0) target = $region45
    $region44: #{tpu_custom_call.1} parent=1 // pred_region
      %82 = dma.done [#allocation7], 12288
    $region45: #{tpu_custom_call.1} parent=1 // pred_fallthru
      _
    // Predicated region
    $region46: #{tpu_custom_call.1} parent=1 // pred_check
      _
    $region47: #{tpu_custom_call.1} parent=1 // pred_check_branch
      %84 = sbr.rel (0) target = $region49
    $region48: #{tpu_custom_call.1} parent=1 // pred_region
      %85 = dma.done [#allocation10], 3072
    $region49: #{tpu_custom_call.1} parent=1 // pred_fallthru
      _
    %v87 = vld [vmem:[#allocation3] sm:$0xff]
    %v88 = vld [vmem:[#allocation3 + $0x8] sm:$0xff]
    %v89 = vld [vmem:[#allocation3 + $0x10] sm:$0xff]
    %v90 = vld [vmem:[#allocation3 + $0x18] sm:$0xff]
    %v91 = vld [vmem:[#allocation3 + $0x20] sm:$0xff]
    %v92 = vld [vmem:[#allocation3 + $0x28] sm:$0xff]
    %v93 = vld [vmem:[#allocation3 + $0x30] sm:$0xff]
    %v94 = vld [vmem:[#allocation3 + $0x38] sm:$0xff]
    %v103 = vcombine.low %v87, %v89
    %v104 = vcombine.high %v87, %v89
    %v105 = vcombine.low %v91, %v93
    %v106 = vcombine.high %v91, %v93
    %v108 = vunpack.c.l.s4 1983009808
    %v109 = vunpack.c.0.s8 %v108
    %v110 = vlaneseq
    %v111 = vshrl.u32 %v110, 7
    %v112 = vsub.s32 %v109, %v111
    %v113 = vrot.slane %v103, %v112
    %v115 = vunpack.c.l.s4 1983009808
    %v116 = vunpack.c.0.s8 %v115
    %v117 = vlaneseq
    %v118 = vshrl.u32 %v117, 7
    %v119 = vsub.s32 %v116, %v118
    %v120 = vrot.slane %v104, %v119
    %v122 = vunpack.c.l.s4 1983009808
    %v123 = vunpack.c.0.s8 %v122
    %v124 = vlaneseq
    %v125 = vshrl.u32 %v124, 7
    %v126 = vsub.s32 %v123, %v125
    %v127 = vrot.slane %v105, %v126
    %v129 = vunpack.c.l.s4 1983009808
    %v130 = vunpack.c.0.s8 %v129
    %v131 = vlaneseq
    %v132 = vshrl.u32 %v131, 7
    %v133 = vsub.s32 %v130, %v132
    %v134 = vrot.slane %v106, %v133
    %v135 = vcombine.low %v113, %v127
    %v136 = vcombine.high %v113, %v127
    %v137 = vcombine.low %v120, %v134
    %v138 = vcombine.high %v120, %v134
    %v139 = vcombine.low %v88, %v90
    %v140 = vcombine.high %v88, %v90
    %v141 = vcombine.low %v92, %v94
    %v142 = vcombine.high %v92, %v94
    %v144 = vunpack.c.l.s4 1983009808
    %v145 = vunpack.c.0.s8 %v144
    %v146 = vlaneseq
    %v147 = vshrl.u32 %v146, 7
    %v148 = vsub.s32 %v145, %v147
    %v149 = vrot.slane %v139, %v148
    %v151 = vunpack.c.l.s4 1983009808
    %v152 = vunpack.c.0.s8 %v151
    %v153 = vlaneseq
    %v154 = vshrl.u32 %v153, 7
    %v155 = vsub.s32 %v152, %v154
    %v156 = vrot.slane %v140, %v155
    %v158 = vunpack.c.l.s4 1983009808
    %v159 = vunpack.c.0.s8 %v158
    %v160 = vlaneseq
    %v161 = vshrl.u32 %v160, 7
    %v162 = vsub.s32 %v159, %v161
    %v163 = vrot.slane %v141, %v162
    %v165 = vunpack.c.l.s4 1983009808
    %v166 = vunpack.c.0.s8 %v165
    %v167 = vlaneseq
    %v168 = vshrl.u32 %v167, 7
    %v169 = vsub.s32 %v166, %v168
    %v170 = vrot.slane %v142, %v169
    %v171 = vcombine.low %v149, %v163
    %v172 = vcombine.high %v149, %v163
    %v173 = vcombine.low %v156, %v170
    %v174 = vcombine.high %v156, %v170
    %v183 = vpack.c.bf16 %v135, %v135
    %v184 = vpack.c.bf16 %v136, %v136
    %v185 = vpack.c.bf16 %v137, %v137
    %v186 = vpack.c.bf16 %v138, %v138
    %v187 = vpack.c.bf16 %v171, %v171
    %v188 = vpack.c.bf16 %v172, %v172
    %v189 = vpack.c.bf16 %v173, %v173
    %v190 = vpack.c.bf16 %v174, %v174
    %v191 = vld [vmem:[#allocation6] sm:$0xff]
    %v192 = vld [vmem:[#allocation6 + $0x8] sm:$0xff]
    %v193 = vld [vmem:[#allocation6 + $0x10] sm:$0xff]
    %v194 = vld [vmem:[#allocation6 + $0x18] sm:$0xff]
    %v195 = vld [vmem:[#allocation6 + $0x20] sm:$0xff]
    %v196 = vld [vmem:[#allocation6 + $0x28] sm:$0xff]
    %v197 = vld [vmem:[#allocation6 + $0x30] sm:$0xff]
    %v198 = vld [vmem:[#allocation6 + $0x38] sm:$0xff]
    %v199 = vld [vmem:[#allocation6 + $0x40] sm:$0xff]
    %v200 = vld [vmem:[#allocation6 + $0x48] sm:$0xff]
    %v201 = vld [vmem:[#allocation6 + $0x50] sm:$0xff]
    %v202 = vld [vmem:[#allocation6 + $0x58] sm:$0xff]
    %v203 = vld [vmem:[#allocation6 + $0x60] sm:$0xff]
    %v204 = vld [vmem:[#allocation6 + $0x68] sm:$0xff]
    %v205 = vld [vmem:[#allocation6 + $0x70] sm:$0xff]
    %v206 = vld [vmem:[#allocation6 + $0x78] sm:$0xff]
    %v207 = vld [vmem:[#allocation6 + $0x80] sm:$0xff]
    %v208 = vld [vmem:[#allocation6 + $0x88] sm:$0xff]
    %v209 = vld [vmem:[#allocation6 + $0x90] sm:$0xff]
    %v210 = vld [vmem:[#allocation6 + $0x98] sm:$0xff]
    %v211 = vld [vmem:[#allocation6 + $0xa0] sm:$0xff]
    %v212 = vld [vmem:[#allocation6 + $0xa8] sm:$0xff]
    %v213 = vld [vmem:[#allocation6 + $0xb0] sm:$0xff]
    %v214 = vld [vmem:[#allocation6 + $0xb8] sm:$0xff]
    %v215 = vld [vmem:[#allocation6 + $0xc0] sm:$0xff]
    %v216 = vld [vmem:[#allocation6 + $0xc8] sm:$0xff]
    %v217 = vld [vmem:[#allocation6 + $0xd0] sm:$0xff]
    %v218 = vld [vmem:[#allocation6 + $0xd8] sm:$0xff]
    %v219 = vld [vmem:[#allocation6 + $0xe0] sm:$0xff]
    %v220 = vld [vmem:[#allocation6 + $0xe8] sm:$0xff]
    %v221 = vld [vmem:[#allocation6 + $0xf0] sm:$0xff]
    %v222 = vld [vmem:[#allocation6 + $0xf8] sm:$0xff]
    %v223 = vld [vmem:[#allocation6 + $0x100] sm:$0xff]
    %v224 = vld [vmem:[#allocation6 + $0x108] sm:$0xff]
    %v225 = vld [vmem:[#allocation6 + $0x110] sm:$0xff]
    %v226 = vld [vmem:[#allocation6 + $0x118] sm:$0xff]
    %v227 = vld [vmem:[#allocation6 + $0x120] sm:$0xff]
    %v228 = vld [vmem:[#allocation6 + $0x128] sm:$0xff]
    %v229 = vld [vmem:[#allocation6 + $0x130] sm:$0xff]
    %v230 = vld [vmem:[#allocation6 + $0x138] sm:$0xff]
    %v231 = vld [vmem:[#allocation6 + $0x140] sm:$0xff]
    %v232 = vld [vmem:[#allocation6 + $0x148] sm:$0xff]
    %v233 = vld [vmem:[#allocation6 + $0x150] sm:$0xff]
    %v234 = vld [vmem:[#allocation6 + $0x158] sm:$0xff]
    %v235 = vld [vmem:[#allocation6 + $0x160] sm:$0xff]
    %v236 = vld [vmem:[#allocation6 + $0x168] sm:$0xff]
    %v237 = vld [vmem:[#allocation6 + $0x170] sm:$0xff]
    %v238 = vld [vmem:[#allocation6 + $0x178] sm:$0xff]
    %v239 = vld [vmem:[#allocation6 + $0x180] sm:$0xff]
    %v240 = vld [vmem:[#allocation6 + $0x188] sm:$0xff]
    %v241 = vld [vmem:[#allocation6 + $0x190] sm:$0xff]
    %v242 = vld [vmem:[#allocation6 + $0x198] sm:$0xff]
    %v243 = vld [vmem:[#allocation6 + $0x1a0] sm:$0xff]
    %v244 = vld [vmem:[#allocation6 + $0x1a8] sm:$0xff]
    %v245 = vld [vmem:[#allocation6 + $0x1b0] sm:$0xff]
    %v246 = vld [vmem:[#allocation6 + $0x1b8] sm:$0xff]
    %v247 = vld [vmem:[#allocation6 + $0x1c0] sm:$0xff]
    %v248 = vld [vmem:[#allocation6 + $0x1c8] sm:$0xff]
    %v249 = vld [vmem:[#allocation6 + $0x1d0] sm:$0xff]
    %v250 = vld [vmem:[#allocation6 + $0x1d8] sm:$0xff]
    %v251 = vld [vmem:[#allocation6 + $0x1e0] sm:$0xff]
    %v252 = vld [vmem:[#allocation6 + $0x1e8] sm:$0xff]
    %v253 = vld [vmem:[#allocation6 + $0x1f0] sm:$0xff]
    %v254 = vld [vmem:[#allocation6 + $0x1f8] sm:$0xff]
    %v255 = vld [vmem:[#allocation6 + $0x200] sm:$0xff]
    %v256 = vld [vmem:[#allocation6 + $0x208] sm:$0xff]
    %v257 = vld [vmem:[#allocation6 + $0x210] sm:$0xff]
    %v258 = vld [vmem:[#allocation6 + $0x218] sm:$0xff]
    %v259 = vld [vmem:[#allocation6 + $0x220] sm:$0xff]
    %v260 = vld [vmem:[#allocation6 + $0x228] sm:$0xff]
    %v261 = vld [vmem:[#allocation6 + $0x230] sm:$0xff]
    %v262 = vld [vmem:[#allocation6 + $0x238] sm:$0xff]
    %v263 = vld [vmem:[#allocation6 + $0x240] sm:$0xff]
    %v264 = vld [vmem:[#allocation6 + $0x248] sm:$0xff]
    %v265 = vld [vmem:[#allocation6 + $0x250] sm:$0xff]
    %v266 = vld [vmem:[#allocation6 + $0x258] sm:$0xff]
    %v267 = vld [vmem:[#allocation6 + $0x260] sm:$0xff]
    %v268 = vld [vmem:[#allocation6 + $0x268] sm:$0xff]
    %v269 = vld [vmem:[#allocation6 + $0x270] sm:$0xff]
    %v270 = vld [vmem:[#allocation6 + $0x278] sm:$0xff]
    %v271 = vld [vmem:[#allocation6 + $0x280] sm:$0xff]
    %v272 = vld [vmem:[#allocation6 + $0x288] sm:$0xff]
    %v273 = vld [vmem:[#allocation6 + $0x290] sm:$0xff]
    %v274 = vld [vmem:[#allocation6 + $0x298] sm:$0xff]
    %v275 = vld [vmem:[#allocation6 + $0x2a0] sm:$0xff]
    %v276 = vld [vmem:[#allocation6 + $0x2a8] sm:$0xff]
    %v277 = vld [vmem:[#allocation6 + $0x2b0] sm:$0xff]
    %v278 = vld [vmem:[#allocation6 + $0x2b8] sm:$0xff]
    %v279 = vld [vmem:[#allocation6 + $0x2c0] sm:$0xff]
    %v280 = vld [vmem:[#allocation6 + $0x2c8] sm:$0xff]
    %v281 = vld [vmem:[#allocation6 + $0x2d0] sm:$0xff]
    %v282 = vld [vmem:[#allocation6 + $0x2d8] sm:$0xff]
    %v283 = vld [vmem:[#allocation6 + $0x2e0] sm:$0xff]
    %v284 = vld [vmem:[#allocation6 + $0x2e8] sm:$0xff]
    %v285 = vld [vmem:[#allocation6 + $0x2f0] sm:$0xff]
    %v286 = vld [vmem:[#allocation6 + $0x2f8] sm:$0xff]
    %v287 = vld [vmem:[#allocation6 + $0x300] sm:$0xff]
    %v288 = vld [vmem:[#allocation6 + $0x308] sm:$0xff]
    %v289 = vld [vmem:[#allocation6 + $0x310] sm:$0xff]
    %v290 = vld [vmem:[#allocation6 + $0x318] sm:$0xff]
    %v291 = vld [vmem:[#allocation6 + $0x320] sm:$0xff]
    %v292 = vld [vmem:[#allocation6 + $0x328] sm:$0xff]
    %v293 = vld [vmem:[#allocation6 + $0x330] sm:$0xff]
    %v294 = vld [vmem:[#allocation6 + $0x338] sm:$0xff]
    %v295 = vld [vmem:[#allocation6 + $0x340] sm:$0xff]
    %v296 = vld [vmem:[#allocation6 + $0x348] sm:$0xff]
    %v297 = vld [vmem:[#allocation6 + $0x350] sm:$0xff]
    %v298 = vld [vmem:[#allocation6 + $0x358] sm:$0xff]
    %v299 = vld [vmem:[#allocation6 + $0x360] sm:$0xff]
    %v300 = vld [vmem:[#allocation6 + $0x368] sm:$0xff]
    %v301 = vld [vmem:[#allocation6 + $0x370] sm:$0xff]
    %v302 = vld [vmem:[#allocation6 + $0x378] sm:$0xff]
    %v303 = vld [vmem:[#allocation6 + $0x380] sm:$0xff]
    %v304 = vld [vmem:[#allocation6 + $0x388] sm:$0xff]
    %v305 = vld [vmem:[#allocation6 + $0x390] sm:$0xff]
    %v306 = vld [vmem:[#allocation6 + $0x398] sm:$0xff]
    %v307 = vld [vmem:[#allocation6 + $0x3a0] sm:$0xff]
    %v308 = vld [vmem:[#allocation6 + $0x3a8] sm:$0xff]
    %v309 = vld [vmem:[#allocation6 + $0x3b0] sm:$0xff]
    %v310 = vld [vmem:[#allocation6 + $0x3b8] sm:$0xff]
    %v311 = vld [vmem:[#allocation6 + $0x3c0] sm:$0xff]
    %v312 = vld [vmem:[#allocation6 + $0x3c8] sm:$0xff]
    %v313 = vld [vmem:[#allocation6 + $0x3d0] sm:$0xff]
    %v314 = vld [vmem:[#allocation6 + $0x3d8] sm:$0xff]
    %v315 = vld [vmem:[#allocation6 + $0x3e0] sm:$0xff]
    %v316 = vld [vmem:[#allocation6 + $0x3e8] sm:$0xff]
    %v317 = vld [vmem:[#allocation6 + $0x3f0] sm:$0xff]
    %v318 = vld [vmem:[#allocation6 + $0x3f8] sm:$0xff]
    %v319 = vld [vmem:[#allocation6 + $0x400] sm:$0xff]
    %v320 = vld [vmem:[#allocation6 + $0x408] sm:$0xff]
    %v321 = vld [vmem:[#allocation6 + $0x410] sm:$0xff]
    %v322 = vld [vmem:[#allocation6 + $0x418] sm:$0xff]
    %v323 = vld [vmem:[#allocation6 + $0x420] sm:$0xff]
    %v324 = vld [vmem:[#allocation6 + $0x428] sm:$0xff]
    %v325 = vld [vmem:[#allocation6 + $0x430] sm:$0xff]
    %v326 = vld [vmem:[#allocation6 + $0x438] sm:$0xff]
    %v327 = vld [vmem:[#allocation6 + $0x440] sm:$0xff]
    %v328 = vld [vmem:[#allocation6 + $0x448] sm:$0xff]
    %v329 = vld [vmem:[#allocation6 + $0x450] sm:$0xff]
    %v330 = vld [vmem:[#allocation6 + $0x458] sm:$0xff]
    %v331 = vld [vmem:[#allocation6 + $0x460] sm:$0xff]
    %v332 = vld [vmem:[#allocation6 + $0x468] sm:$0xff]
    %v333 = vld [vmem:[#allocation6 + $0x470] sm:$0xff]
    %v334 = vld [vmem:[#allocation6 + $0x478] sm:$0xff]
    %v335 = vld [vmem:[#allocation6 + $0x480] sm:$0xff]
    %v336 = vld [vmem:[#allocation6 + $0x488] sm:$0xff]
    %v337 = vld [vmem:[#allocation6 + $0x490] sm:$0xff]
    %v338 = vld [vmem:[#allocation6 + $0x498] sm:$0xff]
    %v339 = vld [vmem:[#allocation6 + $0x4a0] sm:$0xff]
    %v340 = vld [vmem:[#allocation6 + $0x4a8] sm:$0xff]
    %v341 = vld [vmem:[#allocation6 + $0x4b0] sm:$0xff]
    %v342 = vld [vmem:[#allocation6 + $0x4b8] sm:$0xff]
    %v343 = vld [vmem:[#allocation6 + $0x4c0] sm:$0xff]
    %v344 = vld [vmem:[#allocation6 + $0x4c8] sm:$0xff]
    %v345 = vld [vmem:[#allocation6 + $0x4d0] sm:$0xff]
    %v346 = vld [vmem:[#allocation6 + $0x4d8] sm:$0xff]
    %v347 = vld [vmem:[#allocation6 + $0x4e0] sm:$0xff]
    %v348 = vld [vmem:[#allocation6 + $0x4e8] sm:$0xff]
    %v349 = vld [vmem:[#allocation6 + $0x4f0] sm:$0xff]
    %v350 = vld [vmem:[#allocation6 + $0x4f8] sm:$0xff]
    %v351 = vld [vmem:[#allocation6 + $0x500] sm:$0xff]
    %v352 = vld [vmem:[#allocation6 + $0x508] sm:$0xff]
    %v353 = vld [vmem:[#allocation6 + $0x510] sm:$0xff]
    %v354 = vld [vmem:[#allocation6 + $0x518] sm:$0xff]
    %v355 = vld [vmem:[#allocation6 + $0x520] sm:$0xff]
    %v356 = vld [vmem:[#allocation6 + $0x528] sm:$0xff]
    %v357 = vld [vmem:[#allocation6 + $0x530] sm:$0xff]
    %v358 = vld [vmem:[#allocation6 + $0x538] sm:$0xff]
    %v359 = vld [vmem:[#allocation6 + $0x540] sm:$0xff]
    %v360 = vld [vmem:[#allocation6 + $0x548] sm:$0xff]
    %v361 = vld [vmem:[#allocation6 + $0x550] sm:$0xff]
    %v362 = vld [vmem:[#allocation6 + $0x558] sm:$0xff]
    %v363 = vld [vmem:[#allocation6 + $0x560] sm:$0xff]
    %v364 = vld [vmem:[#allocation6 + $0x568] sm:$0xff]
    %v365 = vld [vmem:[#allocation6 + $0x570] sm:$0xff]
    %v366 = vld [vmem:[#allocation6 + $0x578] sm:$0xff]
    %v367 = vld [vmem:[#allocation6 + $0x580] sm:$0xff]
    %v368 = vld [vmem:[#allocation6 + $0x588] sm:$0xff]
    %v369 = vld [vmem:[#allocation6 + $0x590] sm:$0xff]
    %v370 = vld [vmem:[#allocation6 + $0x598] sm:$0xff]
    %v371 = vld [vmem:[#allocation6 + $0x5a0] sm:$0xff]
    %v372 = vld [vmem:[#allocation6 + $0x5a8] sm:$0xff]
    %v373 = vld [vmem:[#allocation6 + $0x5b0] sm:$0xff]
    %v374 = vld [vmem:[#allocation6 + $0x5b8] sm:$0xff]
    %v375 = vld [vmem:[#allocation6 + $0x5c0] sm:$0xff]
    %v376 = vld [vmem:[#allocation6 + $0x5c8] sm:$0xff]
    %v377 = vld [vmem:[#allocation6 + $0x5d0] sm:$0xff]
    %v378 = vld [vmem:[#allocation6 + $0x5d8] sm:$0xff]
    %v379 = vld [vmem:[#allocation6 + $0x5e0] sm:$0xff]
    %v380 = vld [vmem:[#allocation6 + $0x5e8] sm:$0xff]
    %v381 = vld [vmem:[#allocation6 + $0x5f0] sm:$0xff]
    %v382 = vld [vmem:[#allocation6 + $0x5f8] sm:$0xff]
    %v383 = vld [vmem:[#allocation6 + $0x600] sm:$0xff]
    %v384 = vld [vmem:[#allocation6 + $0x608] sm:$0xff]
    %v385 = vld [vmem:[#allocation6 + $0x610] sm:$0xff]
    %v386 = vld [vmem:[#allocation6 + $0x618] sm:$0xff]
    %v387 = vld [vmem:[#allocation6 + $0x620] sm:$0xff]
    %v388 = vld [vmem:[#allocation6 + $0x628] sm:$0xff]
    %v389 = vld [vmem:[#allocation6 + $0x630] sm:$0xff]
    %v390 = vld [vmem:[#allocation6 + $0x638] sm:$0xff]
    %v391 = vld [vmem:[#allocation6 + $0x640] sm:$0xff]
    %v392 = vld [vmem:[#allocation6 + $0x648] sm:$0xff]
    %v393 = vld [vmem:[#allocation6 + $0x650] sm:$0xff]
    %v394 = vld [vmem:[#allocation6 + $0x658] sm:$0xff]
    %v395 = vld [vmem:[#allocation6 + $0x660] sm:$0xff]
    %v396 = vld [vmem:[#allocation6 + $0x668] sm:$0xff]
    %v397 = vld [vmem:[#allocation6 + $0x670] sm:$0xff]
    %v398 = vld [vmem:[#allocation6 + $0x678] sm:$0xff]
    %v399 = vld [vmem:[#allocation6 + $0x680] sm:$0xff]
    %v400 = vld [vmem:[#allocation6 + $0x688] sm:$0xff]
    %v401 = vld [vmem:[#allocation6 + $0x690] sm:$0xff]
    %v402 = vld [vmem:[#allocation6 + $0x698] sm:$0xff]
    %v403 = vld [vmem:[#allocation6 + $0x6a0] sm:$0xff]
    %v404 = vld [vmem:[#allocation6 + $0x6a8] sm:$0xff]
    %v405 = vld [vmem:[#allocation6 + $0x6b0] sm:$0xff]
    %v406 = vld [vmem:[#allocation6 + $0x6b8] sm:$0xff]
    %v407 = vld [vmem:[#allocation6 + $0x6c0] sm:$0xff]
    %v408 = vld [vmem:[#allocation6 + $0x6c8] sm:$0xff]
    %v409 = vld [vmem:[#allocation6 + $0x6d0] sm:$0xff]
    %v410 = vld [vmem:[#allocation6 + $0x6d8] sm:$0xff]
    %v411 = vld [vmem:[#allocation6 + $0x6e0] sm:$0xff]
    %v412 = vld [vmem:[#allocation6 + $0x6e8] sm:$0xff]
    %v413 = vld [vmem:[#allocation6 + $0x6f0] sm:$0xff]
    %v414 = vld [vmem:[#allocation6 + $0x6f8] sm:$0xff]
    %v415 = vld [vmem:[#allocation6 + $0x700] sm:$0xff]
    %v416 = vld [vmem:[#allocation6 + $0x708] sm:$0xff]
    %v417 = vld [vmem:[#allocation6 + $0x710] sm:$0xff]
    %v418 = vld [vmem:[#allocation6 + $0x718] sm:$0xff]
    %v419 = vld [vmem:[#allocation6 + $0x720] sm:$0xff]
    %v420 = vld [vmem:[#allocation6 + $0x728] sm:$0xff]
    %v421 = vld [vmem:[#allocation6 + $0x730] sm:$0xff]
    %v422 = vld [vmem:[#allocation6 + $0x738] sm:$0xff]
    %v423 = vld [vmem:[#allocation6 + $0x740] sm:$0xff]
    %v424 = vld [vmem:[#allocation6 + $0x748] sm:$0xff]
    %v425 = vld [vmem:[#allocation6 + $0x750] sm:$0xff]
    %v426 = vld [vmem:[#allocation6 + $0x758] sm:$0xff]
    %v427 = vld [vmem:[#allocation6 + $0x760] sm:$0xff]
    %v428 = vld [vmem:[#allocation6 + $0x768] sm:$0xff]
    %v429 = vld [vmem:[#allocation6 + $0x770] sm:$0xff]
    %v430 = vld [vmem:[#allocation6 + $0x778] sm:$0xff]
    %v431 = vld [vmem:[#allocation6 + $0x780] sm:$0xff]
    %v432 = vld [vmem:[#allocation6 + $0x788] sm:$0xff]
    %v433 = vld [vmem:[#allocation6 + $0x790] sm:$0xff]
    %v434 = vld [vmem:[#allocation6 + $0x798] sm:$0xff]
    %v435 = vld [vmem:[#allocation6 + $0x7a0] sm:$0xff]
    %v436 = vld [vmem:[#allocation6 + $0x7a8] sm:$0xff]
    %v437 = vld [vmem:[#allocation6 + $0x7b0] sm:$0xff]
    %v438 = vld [vmem:[#allocation6 + $0x7b8] sm:$0xff]
    %v439 = vld [vmem:[#allocation6 + $0x7c0] sm:$0xff]
    %v440 = vld [vmem:[#allocation6 + $0x7c8] sm:$0xff]
    %v441 = vld [vmem:[#allocation6 + $0x7d0] sm:$0xff]
    %v442 = vld [vmem:[#allocation6 + $0x7d8] sm:$0xff]
    %v443 = vld [vmem:[#allocation6 + $0x7e0] sm:$0xff]
    %v444 = vld [vmem:[#allocation6 + $0x7e8] sm:$0xff]
    %v445 = vld [vmem:[#allocation6 + $0x7f0] sm:$0xff]
    %v446 = vld [vmem:[#allocation6 + $0x7f8] sm:$0xff]
    %v447 = vld [vmem:[%s3] sm:$0xf]
    %v449 = vlaneseq
    %v450 = vshrl.u32 %v449, 7
    %v451 = vsub.s32 0, %v450
    %v452 = vrot.slane %v447, %v451
    %v453 = vlaneseq
    %v454 = vshrl.u32 %v453, 7
    %v455 = vsub.s32 1, %v454
    %v456 = vrot.slane %v447, %v455
    %v457 = vlaneseq
    %v458 = vshrl.u32 %v457, 7
    %v459 = vsub.s32 2, %v458
    %v460 = vrot.slane %v447, %v459
    %v461 = vlaneseq
    %v462 = vshrl.u32 %v461, 7
    %v463 = vsub.s32 3, %v462
    %v464 = vrot.slane %v447, %v463
    %v725 = vunpack.c.l.b16 %v191
    %v726 = vunpack.c.h.b16 %v191
    %v727 = vunpack.c.l.b16 %v192
    %v728 = vunpack.c.h.b16 %v192
    %v729 = vunpack.c.l.b16 %v193
    %v730 = vunpack.c.h.b16 %v193
    %v731 = vunpack.c.l.b16 %v194
    %v732 = vunpack.c.h.b16 %v194
    %v733 = vunpack.c.l.b16 %v195
    %v734 = vunpack.c.h.b16 %v195
    %v735 = vunpack.c.l.b16 %v196
    %v736 = vunpack.c.h.b16 %v196
    %v737 = vunpack.c.l.b16 %v197
    %v738 = vunpack.c.h.b16 %v197
    %v739 = vunpack.c.l.b16 %v198
    %v740 = vunpack.c.h.b16 %v198
    %v741 = vunpack.c.l.b16 %v199
    %v742 = vunpack.c.h.b16 %v199
    %v743 = vunpack.c.l.b16 %v200
    %v744 = vunpack.c.h.b16 %v200
    %v745 = vunpack.c.l.b16 %v201
    %v746 = vunpack.c.h.b16 %v201
    %v747 = vunpack.c.l.b16 %v202
    %v748 = vunpack.c.h.b16 %v202
    %v749 = vunpack.c.l.b16 %v203
    %v750 = vunpack.c.h.b16 %v203
    %v751 = vunpack.c.l.b16 %v204
    %v752 = vunpack.c.h.b16 %v204
    %v753 = vunpack.c.l.b16 %v205
    %v754 = vunpack.c.h.b16 %v205
    %v755 = vunpack.c.l.b16 %v206
    %v756 = vunpack.c.h.b16 %v206
    %v757 = vunpack.c.l.b16 %v207
    %v758 = vunpack.c.h.b16 %v207
    %v759 = vunpack.c.l.b16 %v208
    %v760 = vunpack.c.h.b16 %v208
    %v761 = vunpack.c.l.b16 %v209
    %v762 = vunpack.c.h.b16 %v209
    %v763 = vunpack.c.l.b16 %v210
    %v764 = vunpack.c.h.b16 %v210
    %v765 = vunpack.c.l.b16 %v211
    %v766 = vunpack.c.h.b16 %v211
    %v767 = vunpack.c.l.b16 %v212
    %v768 = vunpack.c.h.b16 %v212
    %v769 = vunpack.c.l.b16 %v213
    %v770 = vunpack.c.h.b16 %v213
    %v771 = vunpack.c.l.b16 %v214
    %v772 = vunpack.c.h.b16 %v214
    %v773 = vunpack.c.l.b16 %v215
    %v774 = vunpack.c.h.b16 %v215
    %v775 = vunpack.c.l.b16 %v216
    %v776 = vunpack.c.h.b16 %v216
    %v777 = vunpack.c.l.b16 %v217
    %v778 = vunpack.c.h.b16 %v217
    %v779 = vunpack.c.l.b16 %v218
    %v780 = vunpack.c.h.b16 %v218
    %v781 = vunpack.c.l.b16 %v219
    %v782 = vunpack.c.h.b16 %v219
    %v783 = vunpack.c.l.b16 %v220
    %v784 = vunpack.c.h.b16 %v220
    %v785 = vunpack.c.l.b16 %v221
    %v786 = vunpack.c.h.b16 %v221
    %v787 = vunpack.c.l.b16 %v222
    %v788 = vunpack.c.h.b16 %v222
    %v789 = vunpack.c.l.b16 %v223
    %v790 = vunpack.c.h.b16 %v223
    %v791 = vunpack.c.l.b16 %v224
    %v792 = vunpack.c.h.b16 %v224
    %v793 = vunpack.c.l.b16 %v225
    %v794 = vunpack.c.h.b16 %v225
    %v795 = vunpack.c.l.b16 %v226
    %v796 = vunpack.c.h.b16 %v226
    %v797 = vunpack.c.l.b16 %v227
    %v798 = vunpack.c.h.b16 %v227
    %v799 = vunpack.c.l.b16 %v228
    %v800 = vunpack.c.h.b16 %v228
    %v801 = vunpack.c.l.b16 %v229
    %v802 = vunpack.c.h.b16 %v229
    %v803 = vunpack.c.l.b16 %v230
    %v804 = vunpack.c.h.b16 %v230
    %v805 = vunpack.c.l.b16 %v231
    %v806 = vunpack.c.h.b16 %v231
    %v807 = vunpack.c.l.b16 %v232
    %v808 = vunpack.c.h.b16 %v232
    %v809 = vunpack.c.l.b16 %v233
    %v810 = vunpack.c.h.b16 %v233
    %v811 = vunpack.c.l.b16 %v234
    %v812 = vunpack.c.h.b16 %v234
    %v813 = vunpack.c.l.b16 %v235
    %v814 = vunpack.c.h.b16 %v235
    %v815 = vunpack.c.l.b16 %v236
    %v816 = vunpack.c.h.b16 %v236
    %v817 = vunpack.c.l.b16 %v237
    %v818 = vunpack.c.h.b16 %v237
    %v819 = vunpack.c.l.b16 %v238
    %v820 = vunpack.c.h.b16 %v238
    %v821 = vunpack.c.l.b16 %v239
    %v822 = vunpack.c.h.b16 %v239
    %v823 = vunpack.c.l.b16 %v240
    %v824 = vunpack.c.h.b16 %v240
    %v825 = vunpack.c.l.b16 %v241
    %v826 = vunpack.c.h.b16 %v241
    %v827 = vunpack.c.l.b16 %v242
    %v828 = vunpack.c.h.b16 %v242
    %v829 = vunpack.c.l.b16 %v243
    %v830 = vunpack.c.h.b16 %v243
    %v831 = vunpack.c.l.b16 %v244
    %v832 = vunpack.c.h.b16 %v244
    %v833 = vunpack.c.l.b16 %v245
    %v834 = vunpack.c.h.b16 %v245
    %v835 = vunpack.c.l.b16 %v246
    %v836 = vunpack.c.h.b16 %v246
    %v837 = vunpack.c.l.b16 %v247
    %v838 = vunpack.c.h.b16 %v247
    %v839 = vunpack.c.l.b16 %v248
    %v840 = vunpack.c.h.b16 %v248
    %v841 = vunpack.c.l.b16 %v249
    %v842 = vunpack.c.h.b16 %v249
    %v843 = vunpack.c.l.b16 %v250
    %v844 = vunpack.c.h.b16 %v250
    %v845 = vunpack.c.l.b16 %v251
    %v846 = vunpack.c.h.b16 %v251
    %v847 = vunpack.c.l.b16 %v252
    %v848 = vunpack.c.h.b16 %v252
    %v849 = vunpack.c.l.b16 %v253
    %v850 = vunpack.c.h.b16 %v253
    %v851 = vunpack.c.l.b16 %v254
    %v852 = vunpack.c.h.b16 %v254
    %v853 = vunpack.c.l.b16 %v255
    %v854 = vunpack.c.h.b16 %v255
    %v855 = vunpack.c.l.b16 %v256
    %v856 = vunpack.c.h.b16 %v256
    %v857 = vunpack.c.l.b16 %v257
    %v858 = vunpack.c.h.b16 %v257
    %v859 = vunpack.c.l.b16 %v258
    %v860 = vunpack.c.h.b16 %v258
    %v861 = vunpack.c.l.b16 %v259
    %v862 = vunpack.c.h.b16 %v259
    %v863 = vunpack.c.l.b16 %v260
    %v864 = vunpack.c.h.b16 %v260
    %v865 = vunpack.c.l.b16 %v261
    %v866 = vunpack.c.h.b16 %v261
    %v867 = vunpack.c.l.b16 %v262
    %v868 = vunpack.c.h.b16 %v262
    %v869 = vunpack.c.l.b16 %v263
    %v870 = vunpack.c.h.b16 %v263
    %v871 = vunpack.c.l.b16 %v264
    %v872 = vunpack.c.h.b16 %v264
    %v873 = vunpack.c.l.b16 %v265
    %v874 = vunpack.c.h.b16 %v265
    %v875 = vunpack.c.l.b16 %v266
    %v876 = vunpack.c.h.b16 %v266
    %v877 = vunpack.c.l.b16 %v267
    %v878 = vunpack.c.h.b16 %v267
    %v879 = vunpack.c.l.b16 %v268
    %v880 = vunpack.c.h.b16 %v268
    %v881 = vunpack.c.l.b16 %v269
    %v882 = vunpack.c.h.b16 %v269
    %v883 = vunpack.c.l.b16 %v270
    %v884 = vunpack.c.h.b16 %v270
    %v885 = vunpack.c.l.b16 %v271
    %v886 = vunpack.c.h.b16 %v271
    %v887 = vunpack.c.l.b16 %v272
    %v888 = vunpack.c.h.b16 %v272
    %v889 = vunpack.c.l.b16 %v273
    %v890 = vunpack.c.h.b16 %v273
    %v891 = vunpack.c.l.b16 %v274
    %v892 = vunpack.c.h.b16 %v274
    %v893 = vunpack.c.l.b16 %v275
    %v894 = vunpack.c.h.b16 %v275
    %v895 = vunpack.c.l.b16 %v276
    %v896 = vunpack.c.h.b16 %v276
    %v897 = vunpack.c.l.b16 %v277
    %v898 = vunpack.c.h.b16 %v277
    %v899 = vunpack.c.l.b16 %v278
    %v900 = vunpack.c.h.b16 %v278
    %v901 = vunpack.c.l.b16 %v279
    %v902 = vunpack.c.h.b16 %v279
    %v903 = vunpack.c.l.b16 %v280
    %v904 = vunpack.c.h.b16 %v280
    %v905 = vunpack.c.l.b16 %v281
    %v906 = vunpack.c.h.b16 %v281
    %v907 = vunpack.c.l.b16 %v282
    %v908 = vunpack.c.h.b16 %v282
    %v909 = vunpack.c.l.b16 %v283
    %v910 = vunpack.c.h.b16 %v283
    %v911 = vunpack.c.l.b16 %v284
    %v912 = vunpack.c.h.b16 %v284
    %v913 = vunpack.c.l.b16 %v285
    %v914 = vunpack.c.h.b16 %v285
    %v915 = vunpack.c.l.b16 %v286
    %v916 = vunpack.c.h.b16 %v286
    %v917 = vunpack.c.l.b16 %v287
    %v918 = vunpack.c.h.b16 %v287
    %v919 = vunpack.c.l.b16 %v288
    %v920 = vunpack.c.h.b16 %v288
    %v921 = vunpack.c.l.b16 %v289
    %v922 = vunpack.c.h.b16 %v289
    %v923 = vunpack.c.l.b16 %v290
    %v924 = vunpack.c.h.b16 %v290
    %v925 = vunpack.c.l.b16 %v291
    %v926 = vunpack.c.h.b16 %v291
    %v927 = vunpack.c.l.b16 %v292
    %v928 = vunpack.c.h.b16 %v292
    %v929 = vunpack.c.l.b16 %v293
    %v930 = vunpack.c.h.b16 %v293
    %v931 = vunpack.c.l.b16 %v294
    %v932 = vunpack.c.h.b16 %v294
    %v933 = vunpack.c.l.b16 %v295
    %v934 = vunpack.c.h.b16 %v295
    %v935 = vunpack.c.l.b16 %v296
    %v936 = vunpack.c.h.b16 %v296
    %v937 = vunpack.c.l.b16 %v297
    %v938 = vunpack.c.h.b16 %v297
    %v939 = vunpack.c.l.b16 %v298
    %v940 = vunpack.c.h.b16 %v298
    %v941 = vunpack.c.l.b16 %v299
    %v942 = vunpack.c.h.b16 %v299
    %v943 = vunpack.c.l.b16 %v300
    %v944 = vunpack.c.h.b16 %v300
    %v945 = vunpack.c.l.b16 %v301
    %v946 = vunpack.c.h.b16 %v301
    %v947 = vunpack.c.l.b16 %v302
    %v948 = vunpack.c.h.b16 %v302
    %v949 = vunpack.c.l.b16 %v303
    %v950 = vunpack.c.h.b16 %v303
    %v951 = vunpack.c.l.b16 %v304
    %v952 = vunpack.c.h.b16 %v304
    %v953 = vunpack.c.l.b16 %v305
    %v954 = vunpack.c.h.b16 %v305
    %v955 = vunpack.c.l.b16 %v306
    %v956 = vunpack.c.h.b16 %v306
    %v957 = vunpack.c.l.b16 %v307
    %v958 = vunpack.c.h.b16 %v307
    %v959 = vunpack.c.l.b16 %v308
    %v960 = vunpack.c.h.b16 %v308
    %v961 = vunpack.c.l.b16 %v309
    %v962 = vunpack.c.h.b16 %v309
    %v963 = vunpack.c.l.b16 %v310
    %v964 = vunpack.c.h.b16 %v310
    %v965 = vunpack.c.l.b16 %v311
    %v966 = vunpack.c.h.b16 %v311
    %v967 = vunpack.c.l.b16 %v312
    %v968 = vunpack.c.h.b16 %v312
    %v969 = vunpack.c.l.b16 %v313
    %v970 = vunpack.c.h.b16 %v313
    %v971 = vunpack.c.l.b16 %v314
    %v972 = vunpack.c.h.b16 %v314
    %v973 = vunpack.c.l.b16 %v315
    %v974 = vunpack.c.h.b16 %v315
    %v975 = vunpack.c.l.b16 %v316
    %v976 = vunpack.c.h.b16 %v316
    %v977 = vunpack.c.l.b16 %v317
    %v978 = vunpack.c.h.b16 %v317
    %v979 = vunpack.c.l.b16 %v318
    %v980 = vunpack.c.h.b16 %v318
    %v981 = vunpack.c.l.b16 %v319
    %v982 = vunpack.c.h.b16 %v319
    %v983 = vunpack.c.l.b16 %v320
    %v984 = vunpack.c.h.b16 %v320
    %v985 = vunpack.c.l.b16 %v321
    %v986 = vunpack.c.h.b16 %v321
    %v987 = vunpack.c.l.b16 %v322
    %v988 = vunpack.c.h.b16 %v322
    %v989 = vunpack.c.l.b16 %v323
    %v990 = vunpack.c.h.b16 %v323
    %v991 = vunpack.c.l.b16 %v324
    %v992 = vunpack.c.h.b16 %v324
    %v993 = vunpack.c.l.b16 %v325
    %v994 = vunpack.c.h.b16 %v325
    %v995 = vunpack.c.l.b16 %v326
    %v996 = vunpack.c.h.b16 %v326
    %v997 = vunpack.c.l.b16 %v327
    %v998 = vunpack.c.h.b16 %v327
    %v999 = vunpack.c.l.b16 %v328
    %v1000 = vunpack.c.h.b16 %v328
    %v1001 = vunpack.c.l.b16 %v329
    %v1002 = vunpack.c.h.b16 %v329
    %v1003 = vunpack.c.l.b16 %v330
    %v1004 = vunpack.c.h.b16 %v330
    %v1005 = vunpack.c.l.b16 %v331
    %v1006 = vunpack.c.h.b16 %v331
    %v1007 = vunpack.c.l.b16 %v332
    %v1008 = vunpack.c.h.b16 %v332
    %v1009 = vunpack.c.l.b16 %v333
    %v1010 = vunpack.c.h.b16 %v333
    %v1011 = vunpack.c.l.b16 %v334
    %v1012 = vunpack.c.h.b16 %v334
    %v1013 = vunpack.c.l.b16 %v335
    %v1014 = vunpack.c.h.b16 %v335
    %v1015 = vunpack.c.l.b16 %v336
    %v1016 = vunpack.c.h.b16 %v336
    %v1017 = vunpack.c.l.b16 %v337
    %v1018 = vunpack.c.h.b16 %v337
    %v1019 = vunpack.c.l.b16 %v338
    %v1020 = vunpack.c.h.b16 %v338
    %v1021 = vunpack.c.l.b16 %v339
    %v1022 = vunpack.c.h.b16 %v339
    %v1023 = vunpack.c.l.b16 %v340
    %v1024 = vunpack.c.h.b16 %v340
    %v1025 = vunpack.c.l.b16 %v341
    %v1026 = vunpack.c.h.b16 %v341
    %v1027 = vunpack.c.l.b16 %v342
    %v1028 = vunpack.c.h.b16 %v342
    %v1029 = vunpack.c.l.b16 %v343
    %v1030 = vunpack.c.h.b16 %v343
    %v1031 = vunpack.c.l.b16 %v344
    %v1032 = vunpack.c.h.b16 %v344
    %v1033 = vunpack.c.l.b16 %v345
    %v1034 = vunpack.c.h.b16 %v345
    %v1035 = vunpack.c.l.b16 %v346
    %v1036 = vunpack.c.h.b16 %v346
    %v1037 = vunpack.c.l.b16 %v347
    %v1038 = vunpack.c.h.b16 %v347
    %v1039 = vunpack.c.l.b16 %v348
    %v1040 = vunpack.c.h.b16 %v348
    %v1041 = vunpack.c.l.b16 %v349
    %v1042 = vunpack.c.h.b16 %v349
    %v1043 = vunpack.c.l.b16 %v350
    %v1044 = vunpack.c.h.b16 %v350
    %v1045 = vunpack.c.l.b16 %v351
    %v1046 = vunpack.c.h.b16 %v351
    %v1047 = vunpack.c.l.b16 %v352
    %v1048 = vunpack.c.h.b16 %v352
    %v1049 = vunpack.c.l.b16 %v353
    %v1050 = vunpack.c.h.b16 %v353
    %v1051 = vunpack.c.l.b16 %v354
    %v1052 = vunpack.c.h.b16 %v354
    %v1053 = vunpack.c.l.b16 %v355
    %v1054 = vunpack.c.h.b16 %v355
    %v1055 = vunpack.c.l.b16 %v356
    %v1056 = vunpack.c.h.b16 %v356
    %v1057 = vunpack.c.l.b16 %v357
    %v1058 = vunpack.c.h.b16 %v357
    %v1059 = vunpack.c.l.b16 %v358
    %v1060 = vunpack.c.h.b16 %v358
    %v1061 = vunpack.c.l.b16 %v359
    %v1062 = vunpack.c.h.b16 %v359
    %v1063 = vunpack.c.l.b16 %v360
    %v1064 = vunpack.c.h.b16 %v360
    %v1065 = vunpack.c.l.b16 %v361
    %v1066 = vunpack.c.h.b16 %v361
    %v1067 = vunpack.c.l.b16 %v362
    %v1068 = vunpack.c.h.b16 %v362
    %v1069 = vunpack.c.l.b16 %v363
    %v1070 = vunpack.c.h.b16 %v363
    %v1071 = vunpack.c.l.b16 %v364
    %v1072 = vunpack.c.h.b16 %v364
    %v1073 = vunpack.c.l.b16 %v365
    %v1074 = vunpack.c.h.b16 %v365
    %v1075 = vunpack.c.l.b16 %v366
    %v1076 = vunpack.c.h.b16 %v366
    %v1077 = vunpack.c.l.b16 %v367
    %v1078 = vunpack.c.h.b16 %v367
    %v1079 = vunpack.c.l.b16 %v368
    %v1080 = vunpack.c.h.b16 %v368
    %v1081 = vunpack.c.l.b16 %v369
    %v1082 = vunpack.c.h.b16 %v369
    %v1083 = vunpack.c.l.b16 %v370
    %v1084 = vunpack.c.h.b16 %v370
    %v1085 = vunpack.c.l.b16 %v371
    %v1086 = vunpack.c.h.b16 %v371
    %v1087 = vunpack.c.l.b16 %v372
    %v1088 = vunpack.c.h.b16 %v372
    %v1089 = vunpack.c.l.b16 %v373
    %v1090 = vunpack.c.h.b16 %v373
    %v1091 = vunpack.c.l.b16 %v374
    %v1092 = vunpack.c.h.b16 %v374
    %v1093 = vunpack.c.l.b16 %v375
    %v1094 = vunpack.c.h.b16 %v375
    %v1095 = vunpack.c.l.b16 %v376
    %v1096 = vunpack.c.h.b16 %v376
    %v1097 = vunpack.c.l.b16 %v377
    %v1098 = vunpack.c.h.b16 %v377
    %v1099 = vunpack.c.l.b16 %v378
    %v1100 = vunpack.c.h.b16 %v378
    %v1101 = vunpack.c.l.b16 %v379
    %v1102 = vunpack.c.h.b16 %v379
    %v1103 = vunpack.c.l.b16 %v380
    %v1104 = vunpack.c.h.b16 %v380
    %v1105 = vunpack.c.l.b16 %v381
    %v1106 = vunpack.c.h.b16 %v381
    %v1107 = vunpack.c.l.b16 %v382
    %v1108 = vunpack.c.h.b16 %v382
    %v1109 = vunpack.c.l.b16 %v383
    %v1110 = vunpack.c.h.b16 %v383
    %v1111 = vunpack.c.l.b16 %v384
    %v1112 = vunpack.c.h.b16 %v384
    %v1113 = vunpack.c.l.b16 %v385
    %v1114 = vunpack.c.h.b16 %v385
    %v1115 = vunpack.c.l.b16 %v386
    %v1116 = vunpack.c.h.b16 %v386
    %v1117 = vunpack.c.l.b16 %v387
    %v1118 = vunpack.c.h.b16 %v387
    %v1119 = vunpack.c.l.b16 %v388
    %v1120 = vunpack.c.h.b16 %v388
    %v1121 = vunpack.c.l.b16 %v389
    %v1122 = vunpack.c.h.b16 %v389
    %v1123 = vunpack.c.l.b16 %v390
    %v1124 = vunpack.c.h.b16 %v390
    %v1125 = vunpack.c.l.b16 %v391
    %v1126 = vunpack.c.h.b16 %v391
    %v1127 = vunpack.c.l.b16 %v392
    %v1128 = vunpack.c.h.b16 %v392
    %v1129 = vunpack.c.l.b16 %v393
    %v1130 = vunpack.c.h.b16 %v393
    %v1131 = vunpack.c.l.b16 %v394
    %v1132 = vunpack.c.h.b16 %v394
    %v1133 = vunpack.c.l.b16 %v395
    %v1134 = vunpack.c.h.b16 %v395
    %v1135 = vunpack.c.l.b16 %v396
    %v1136 = vunpack.c.h.b16 %v396
    %v1137 = vunpack.c.l.b16 %v397
    %v1138 = vunpack.c.h.b16 %v397
    %v1139 = vunpack.c.l.b16 %v398
    %v1140 = vunpack.c.h.b16 %v398
    %v1141 = vunpack.c.l.b16 %v399
    %v1142 = vunpack.c.h.b16 %v399
    %v1143 = vunpack.c.l.b16 %v400
    %v1144 = vunpack.c.h.b16 %v400
    %v1145 = vunpack.c.l.b16 %v401
    %v1146 = vunpack.c.h.b16 %v401
    %v1147 = vunpack.c.l.b16 %v402
    %v1148 = vunpack.c.h.b16 %v402
    %v1149 = vunpack.c.l.b16 %v403
    %v1150 = vunpack.c.h.b16 %v403
    %v1151 = vunpack.c.l.b16 %v404
    %v1152 = vunpack.c.h.b16 %v404
    %v1153 = vunpack.c.l.b16 %v405
    %v1154 = vunpack.c.h.b16 %v405
    %v1155 = vunpack.c.l.b16 %v406
    %v1156 = vunpack.c.h.b16 %v406
    %v1157 = vunpack.c.l.b16 %v407
    %v1158 = vunpack.c.h.b16 %v407
    %v1159 = vunpack.c.l.b16 %v408
    %v1160 = vunpack.c.h.b16 %v408
    %v1161 = vunpack.c.l.b16 %v409
    %v1162 = vunpack.c.h.b16 %v409
    %v1163 = vunpack.c.l.b16 %v410
    %v1164 = vunpack.c.h.b16 %v410
    %v1165 = vunpack.c.l.b16 %v411
    %v1166 = vunpack.c.h.b16 %v411
    %v1167 = vunpack.c.l.b16 %v412
    %v1168 = vunpack.c.h.b16 %v412
    %v1169 = vunpack.c.l.b16 %v413
    %v1170 = vunpack.c.h.b16 %v413
    %v1171 = vunpack.c.l.b16 %v414
    %v1172 = vunpack.c.h.b16 %v414
    %v1173 = vunpack.c.l.b16 %v415
    %v1174 = vunpack.c.h.b16 %v415
    %v1175 = vunpack.c.l.b16 %v416
    %v1176 = vunpack.c.h.b16 %v416
    %v1177 = vunpack.c.l.b16 %v417
    %v1178 = vunpack.c.h.b16 %v417
    %v1179 = vunpack.c.l.b16 %v418
    %v1180 = vunpack.c.h.b16 %v418
    %v1181 = vunpack.c.l.b16 %v419
    %v1182 = vunpack.c.h.b16 %v419
    %v1183 = vunpack.c.l.b16 %v420
    %v1184 = vunpack.c.h.b16 %v420
    %v1185 = vunpack.c.l.b16 %v421
    %v1186 = vunpack.c.h.b16 %v421
    %v1187 = vunpack.c.l.b16 %v422
    %v1188 = vunpack.c.h.b16 %v422
    %v1189 = vunpack.c.l.b16 %v423
    %v1190 = vunpack.c.h.b16 %v423
    %v1191 = vunpack.c.l.b16 %v424
    %v1192 = vunpack.c.h.b16 %v424
    %v1193 = vunpack.c.l.b16 %v425
    %v1194 = vunpack.c.h.b16 %v425
    %v1195 = vunpack.c.l.b16 %v426
    %v1196 = vunpack.c.h.b16 %v426
    %v1197 = vunpack.c.l.b16 %v427
    %v1198 = vunpack.c.h.b16 %v427
    %v1199 = vunpack.c.l.b16 %v428
    %v1200 = vunpack.c.h.b16 %v428
    %v1201 = vunpack.c.l.b16 %v429
    %v1202 = vunpack.c.h.b16 %v429
    %v1203 = vunpack.c.l.b16 %v430
    %v1204 = vunpack.c.h.b16 %v430
    %v1205 = vunpack.c.l.b16 %v431
    %v1206 = vunpack.c.h.b16 %v431
    %v1207 = vunpack.c.l.b16 %v432
    %v1208 = vunpack.c.h.b16 %v432
    %v1209 = vunpack.c.l.b16 %v433
    %v1210 = vunpack.c.h.b16 %v433
    %v1211 = vunpack.c.l.b16 %v434
    %v1212 = vunpack.c.h.b16 %v434
    %v1213 = vunpack.c.l.b16 %v435
    %v1214 = vunpack.c.h.b16 %v435
    %v1215 = vunpack.c.l.b16 %v436
    %v1216 = vunpack.c.h.b16 %v436
    %v1217 = vunpack.c.l.b16 %v437
    %v1218 = vunpack.c.h.b16 %v437
    %v1219 = vunpack.c.l.b16 %v438
    %v1220 = vunpack.c.h.b16 %v438
    %v1221 = vunpack.c.l.b16 %v439
    %v1222 = vunpack.c.h.b16 %v439
    %v1223 = vunpack.c.l.b16 %v440
    %v1224 = vunpack.c.h.b16 %v440
    %v1225 = vunpack.c.l.b16 %v441
    %v1226 = vunpack.c.h.b16 %v441
    %v1227 = vunpack.c.l.b16 %v442
    %v1228 = vunpack.c.h.b16 %v442
    %v1229 = vunpack.c.l.b16 %v443
    %v1230 = vunpack.c.h.b16 %v443
    %v1231 = vunpack.c.l.b16 %v444
    %v1232 = vunpack.c.h.b16 %v444
    %v1233 = vunpack.c.l.b16 %v445
    %v1234 = vunpack.c.h.b16 %v445
    %v1235 = vunpack.c.l.b16 %v446
    %v1236 = vunpack.c.h.b16 %v446
    %v1237 = vpack.c.b16 %v729, %v725
    %v1238 = vpack.c.b16 %v730, %v726
    %v1239 = vpack.c.b16 %v731, %v727
    %v1240 = vpack.c.b16 %v732, %v728
    %v1241 = vpack.c.b16 %v737, %v733
    %v1242 = vpack.c.b16 %v738, %v734
    %v1243 = vpack.c.b16 %v739, %v735
    %v1244 = vpack.c.b16 %v740, %v736
    %v1245 = vpack.c.b16 %v745, %v741
    %v1246 = vpack.c.b16 %v746, %v742
    %v1247 = vpack.c.b16 %v747, %v743
    %v1248 = vpack.c.b16 %v748, %v744
    %v1249 = vpack.c.b16 %v753, %v749
    %v1250 = vpack.c.b16 %v754, %v750
    %v1251 = vpack.c.b16 %v755, %v751
    %v1252 = vpack.c.b16 %v756, %v752
    %v1253 = vpack.c.b16 %v761, %v757
    %v1254 = vpack.c.b16 %v762, %v758
    %v1255 = vpack.c.b16 %v763, %v759
    %v1256 = vpack.c.b16 %v764, %v760
    %v1257 = vpack.c.b16 %v769, %v765
    %v1258 = vpack.c.b16 %v770, %v766
    %v1259 = vpack.c.b16 %v771, %v767
    %v1260 = vpack.c.b16 %v772, %v768
    %v1261 = vpack.c.b16 %v777, %v773
    %v1262 = vpack.c.b16 %v778, %v774
    %v1263 = vpack.c.b16 %v779, %v775
    %v1264 = vpack.c.b16 %v780, %v776
    %v1265 = vpack.c.b16 %v785, %v781
    %v1266 = vpack.c.b16 %v786, %v782
    %v1267 = vpack.c.b16 %v787, %v783
    %v1268 = vpack.c.b16 %v788, %v784
    %v1269 = vpack.c.b16 %v793, %v789
    %v1270 = vpack.c.b16 %v794, %v790
    %v1271 = vpack.c.b16 %v795, %v791
    %v1272 = vpack.c.b16 %v796, %v792
    %v1273 = vpack.c.b16 %v801, %v797
    %v1274 = vpack.c.b16 %v802, %v798
    %v1275 = vpack.c.b16 %v803, %v799
    %v1276 = vpack.c.b16 %v804, %v800
    %v1277 = vpack.c.b16 %v809, %v805
    %v1278 = vpack.c.b16 %v810, %v806
    %v1279 = vpack.c.b16 %v811, %v807
    %v1280 = vpack.c.b16 %v812, %v808
    %v1281 = vpack.c.b16 %v817, %v813
    %v1282 = vpack.c.b16 %v818, %v814
    %v1283 = vpack.c.b16 %v819, %v815
    %v1284 = vpack.c.b16 %v820, %v816
    %v1285 = vpack.c.b16 %v825, %v821
    %v1286 = vpack.c.b16 %v826, %v822
    %v1287 = vpack.c.b16 %v827, %v823
    %v1288 = vpack.c.b16 %v828, %v824
    %v1289 = vpack.c.b16 %v833, %v829
    %v1290 = vpack.c.b16 %v834, %v830
    %v1291 = vpack.c.b16 %v835, %v831
    %v1292 = vpack.c.b16 %v836, %v832
    %v1293 = vpack.c.b16 %v841, %v837
    %v1294 = vpack.c.b16 %v842, %v838
    %v1295 = vpack.c.b16 %v843, %v839
    %v1296 = vpack.c.b16 %v844, %v840
    %v1297 = vpack.c.b16 %v849, %v845
    %v1298 = vpack.c.b16 %v850, %v846
    %v1299 = vpack.c.b16 %v851, %v847
    %v1300 = vpack.c.b16 %v852, %v848
    %v1301 = vpack.c.b16 %v857, %v853
    %v1302 = vpack.c.b16 %v858, %v854
    %v1303 = vpack.c.b16 %v859, %v855
    %v1304 = vpack.c.b16 %v860, %v856
    %v1305 = vpack.c.b16 %v865, %v861
    %v1306 = vpack.c.b16 %v866, %v862
    %v1307 = vpack.c.b16 %v867, %v863
    %v1308 = vpack.c.b16 %v868, %v864
    %v1309 = vpack.c.b16 %v873, %v869
    %v1310 = vpack.c.b16 %v874, %v870
    %v1311 = vpack.c.b16 %v875, %v871
    %v1312 = vpack.c.b16 %v876, %v872
    %v1313 = vpack.c.b16 %v881, %v877
    %v1314 = vpack.c.b16 %v882, %v878
    %v1315 = vpack.c.b16 %v883, %v879
    %v1316 = vpack.c.b16 %v884, %v880
    %v1317 = vpack.c.b16 %v889, %v885
    %v1318 = vpack.c.b16 %v890, %v886
    %v1319 = vpack.c.b16 %v891, %v887
    %v1320 = vpack.c.b16 %v892, %v888
    %v1321 = vpack.c.b16 %v897, %v893
    %v1322 = vpack.c.b16 %v898, %v894
    %v1323 = vpack.c.b16 %v899, %v895
    %v1324 = vpack.c.b16 %v900, %v896
    %v1325 = vpack.c.b16 %v905, %v901
    %v1326 = vpack.c.b16 %v906, %v902
    %v1327 = vpack.c.b16 %v907, %v903
    %v1328 = vpack.c.b16 %v908, %v904
    %v1329 = vpack.c.b16 %v913, %v909
    %v1330 = vpack.c.b16 %v914, %v910
    %v1331 = vpack.c.b16 %v915, %v911
    %v1332 = vpack.c.b16 %v916, %v912
    %v1333 = vpack.c.b16 %v921, %v917
    %v1334 = vpack.c.b16 %v922, %v918
    %v1335 = vpack.c.b16 %v923, %v919
    %v1336 = vpack.c.b16 %v924, %v920
    %v1337 = vpack.c.b16 %v929, %v925
    %v1338 = vpack.c.b16 %v930, %v926
    %v1339 = vpack.c.b16 %v931, %v927
    %v1340 = vpack.c.b16 %v932, %v928
    %v1341 = vpack.c.b16 %v937, %v933
    %v1342 = vpack.c.b16 %v938, %v934
    %v1343 = vpack.c.b16 %v939, %v935
    %v1344 = vpack.c.b16 %v940, %v936
    %v1345 = vpack.c.b16 %v945, %v941
    %v1346 = vpack.c.b16 %v946, %v942
    %v1347 = vpack.c.b16 %v947, %v943
    %v1348 = vpack.c.b16 %v948, %v944
    %v1349 = vpack.c.b16 %v953, %v949
    %v1350 = vpack.c.b16 %v954, %v950
    %v1351 = vpack.c.b16 %v955, %v951
    %v1352 = vpack.c.b16 %v956, %v952
    %v1353 = vpack.c.b16 %v961, %v957
    %v1354 = vpack.c.b16 %v962, %v958
    %v1355 = vpack.c.b16 %v963, %v959
    %v1356 = vpack.c.b16 %v964, %v960
    %v1357 = vpack.c.b16 %v969, %v965
    %v1358 = vpack.c.b16 %v970, %v966
    %v1359 = vpack.c.b16 %v971, %v967
    %v1360 = vpack.c.b16 %v972, %v968
    %v1361 = vpack.c.b16 %v977, %v973
    %v1362 = vpack.c.b16 %v978, %v974
    %v1363 = vpack.c.b16 %v979, %v975
    %v1364 = vpack.c.b16 %v980, %v976
    %v1365 = vpack.c.b16 %v985, %v981
    %v1366 = vpack.c.b16 %v986, %v982
    %v1367 = vpack.c.b16 %v987, %v983
    %v1368 = vpack.c.b16 %v988, %v984
    %v1369 = vpack.c.b16 %v993, %v989
    %v1370 = vpack.c.b16 %v994, %v990
    %v1371 = vpack.c.b16 %v995, %v991
    %v1372 = vpack.c.b16 %v996, %v992
    %v1373 = vpack.c.b16 %v1001, %v997
    %v1374 = vpack.c.b16 %v1002, %v998
    %v1375 = vpack.c.b16 %v1003, %v999
    %v1376 = vpack.c.b16 %v1004, %v1000
    %v1377 = vpack.c.b16 %v1009, %v1005
    %v1378 = vpack.c.b16 %v1010, %v1006
    %v1379 = vpack.c.b16 %v1011, %v1007
    %v1380 = vpack.c.b16 %v1012, %v1008
    %v1381 = vpack.c.b16 %v1017, %v1013
    %v1382 = vpack.c.b16 %v1018, %v1014
    %v1383 = vpack.c.b16 %v1019, %v1015
    %v1384 = vpack.c.b16 %v1020, %v1016
    %v1385 = vpack.c.b16 %v1025, %v1021
    %v1386 = vpack.c.b16 %v1026, %v1022
    %v1387 = vpack.c.b16 %v1027, %v1023
    %v1388 = vpack.c.b16 %v1028, %v1024
    %v1389 = vpack.c.b16 %v1033, %v1029
    %v1390 = vpack.c.b16 %v1034, %v1030
    %v1391 = vpack.c.b16 %v1035, %v1031
    %v1392 = vpack.c.b16 %v1036, %v1032
    %v1393 = vpack.c.b16 %v1041, %v1037
    %v1394 = vpack.c.b16 %v1042, %v1038
    %v1395 = vpack.c.b16 %v1043, %v1039
    %v1396 = vpack.c.b16 %v1044, %v1040
    %v1397 = vpack.c.b16 %v1049, %v1045
    %v1398 = vpack.c.b16 %v1050, %v1046
    %v1399 = vpack.c.b16 %v1051, %v1047
    %v1400 = vpack.c.b16 %v1052, %v1048
    %v1401 = vpack.c.b16 %v1057, %v1053
    %v1402 = vpack.c.b16 %v1058, %v1054
    %v1403 = vpack.c.b16 %v1059, %v1055
    %v1404 = vpack.c.b16 %v1060, %v1056
    %v1405 = vpack.c.b16 %v1065, %v1061
    %v1406 = vpack.c.b16 %v1066, %v1062
    %v1407 = vpack.c.b16 %v1067, %v1063
    %v1408 = vpack.c.b16 %v1068, %v1064
    %v1409 = vpack.c.b16 %v1073, %v1069
    %v1410 = vpack.c.b16 %v1074, %v1070
    %v1411 = vpack.c.b16 %v1075, %v1071
    %v1412 = vpack.c.b16 %v1076, %v1072
    %v1413 = vpack.c.b16 %v1081, %v1077
    %v1414 = vpack.c.b16 %v1082, %v1078
    %v1415 = vpack.c.b16 %v1083, %v1079
    %v1416 = vpack.c.b16 %v1084, %v1080
    %v1417 = vpack.c.b16 %v1089, %v1085
    %v1418 = vpack.c.b16 %v1090, %v1086
    %v1419 = vpack.c.b16 %v1091, %v1087
    %v1420 = vpack.c.b16 %v1092, %v1088
    %v1421 = vpack.c.b16 %v1097, %v1093
    %v1422 = vpack.c.b16 %v1098, %v1094
    %v1423 = vpack.c.b16 %v1099, %v1095
    %v1424 = vpack.c.b16 %v1100, %v1096
    %v1425 = vpack.c.b16 %v1105, %v1101
    %v1426 = vpack.c.b16 %v1106, %v1102
    %v1427 = vpack.c.b16 %v1107, %v1103
    %v1428 = vpack.c.b16 %v1108, %v1104
    %v1429 = vpack.c.b16 %v1113, %v1109
    %v1430 = vpack.c.b16 %v1114, %v1110
    %v1431 = vpack.c.b16 %v1115, %v1111
    %v1432 = vpack.c.b16 %v1116, %v1112
    %v1433 = vpack.c.b16 %v1121, %v1117
    %v1434 = vpack.c.b16 %v1122, %v1118
    %v1435 = vpack.c.b16 %v1123, %v1119
    %v1436 = vpack.c.b16 %v1124, %v1120
    %v1437 = vpack.c.b16 %v1129, %v1125
    %v1438 = vpack.c.b16 %v1130, %v1126
    %v1439 = vpack.c.b16 %v1131, %v1127
    %v1440 = vpack.c.b16 %v1132, %v1128
    %v1441 = vpack.c.b16 %v1137, %v1133
    %v1442 = vpack.c.b16 %v1138, %v1134
    %v1443 = vpack.c.b16 %v1139, %v1135
    %v1444 = vpack.c.b16 %v1140, %v1136
    %v1445 = vpack.c.b16 %v1145, %v1141
    %v1446 = vpack.c.b16 %v1146, %v1142
    %v1447 = vpack.c.b16 %v1147, %v1143
    %v1448 = vpack.c.b16 %v1148, %v1144
    %v1449 = vpack.c.b16 %v1153, %v1149
    %v1450 = vpack.c.b16 %v1154, %v1150
    %v1451 = vpack.c.b16 %v1155, %v1151
    %v1452 = vpack.c.b16 %v1156, %v1152
    %v1453 = vpack.c.b16 %v1161, %v1157
    %v1454 = vpack.c.b16 %v1162, %v1158
    %v1455 = vpack.c.b16 %v1163, %v1159
    %v1456 = vpack.c.b16 %v1164, %v1160
    %v1457 = vpack.c.b16 %v1169, %v1165
    %v1458 = vpack.c.b16 %v1170, %v1166
    %v1459 = vpack.c.b16 %v1171, %v1167
    %v1460 = vpack.c.b16 %v1172, %v1168
    %v1461 = vpack.c.b16 %v1177, %v1173
    %v1462 = vpack.c.b16 %v1178, %v1174
    %v1463 = vpack.c.b16 %v1179, %v1175
    %v1464 = vpack.c.b16 %v1180, %v1176
    %v1465 = vpack.c.b16 %v1185, %v1181
    %v1466 = vpack.c.b16 %v1186, %v1182
    %v1467 = vpack.c.b16 %v1187, %v1183
    %v1468 = vpack.c.b16 %v1188, %v1184
    %v1469 = vpack.c.b16 %v1193, %v1189
    %v1470 = vpack.c.b16 %v1194, %v1190
    %v1471 = vpack.c.b16 %v1195, %v1191
    %v1472 = vpack.c.b16 %v1196, %v1192
    %v1473 = vpack.c.b16 %v1201, %v1197
    %v1474 = vpack.c.b16 %v1202, %v1198
    %v1475 = vpack.c.b16 %v1203, %v1199
    %v1476 = vpack.c.b16 %v1204, %v1200
    %v1477 = vpack.c.b16 %v1209, %v1205
    %v1478 = vpack.c.b16 %v1210, %v1206
    %v1479 = vpack.c.b16 %v1211, %v1207
    %v1480 = vpack.c.b16 %v1212, %v1208
    %v1481 = vpack.c.b16 %v1217, %v1213
    %v1482 = vpack.c.b16 %v1218, %v1214
    %v1483 = vpack.c.b16 %v1219, %v1215
    %v1484 = vpack.c.b16 %v1220, %v1216
    %v1485 = vpack.c.b16 %v1225, %v1221
    %v1486 = vpack.c.b16 %v1226, %v1222
    %v1487 = vpack.c.b16 %v1227, %v1223
    %v1488 = vpack.c.b16 %v1228, %v1224
    %v1489 = vpack.c.b16 %v1233, %v1229
    %v1490 = vpack.c.b16 %v1234, %v1230
    %v1491 = vpack.c.b16 %v1235, %v1231
    %v1492 = vpack.c.b16 %v1236, %v1232
    %1749 = vmatprep.subr.bf16.mxu0 %v1238
    %1750 = vmatpush1.bf16.msra.mxu0 %v1237
    %1751 = vmatprep.subr.bf16.mxu0 %v1242
    %1752 = vmatpush1.bf16.msra.mxu0 %v1241
    %1753 = vmatprep.subr.bf16.mxu0 %v1246
    %1754 = vmatpush1.bf16.msra.mxu0 %v1245
    %1755 = vmatprep.subr.bf16.mxu0 %v1250
    %1756 = vmatpush1.bf16.msra.mxu0 %v1249
    %1757 = vmatprep.subr.bf16.mxu0 %v1254
    %1758 = vmatpush1.bf16.msra.mxu0 %v1253
    %1759 = vmatprep.subr.bf16.mxu0 %v1258
    %1760 = vmatpush1.bf16.msra.mxu0 %v1257
    %1761 = vmatprep.subr.bf16.mxu0 %v1262
    %1762 = vmatpush1.bf16.msra.mxu0 %v1261
    %1763 = vmatprep.subr.bf16.mxu0 %v1266
    %1764 = vmatpush1.bf16.msra.mxu0 %v1265
    %1765 = vmatprep.subr.bf16.mxu0 %v1270
    %1766 = vmatpush1.bf16.msra.mxu0 %v1269
    %1767 = vmatprep.subr.bf16.mxu0 %v1274
    %1768 = vmatpush1.bf16.msra.mxu0 %v1273
    %1769 = vmatprep.subr.bf16.mxu0 %v1278
    %1770 = vmatpush1.bf16.msra.mxu0 %v1277
    %1771 = vmatprep.subr.bf16.mxu0 %v1282
    %1772 = vmatpush1.bf16.msra.mxu0 %v1281
    %1773 = vmatprep.subr.bf16.mxu0 %v1286
    %1774 = vmatpush1.bf16.msra.mxu0 %v1285
    %1775 = vmatprep.subr.bf16.mxu0 %v1290
    %1776 = vmatpush1.bf16.msra.mxu0 %v1289
    %1777 = vmatprep.subr.bf16.mxu0 %v1294
    %1778 = vmatpush1.bf16.msra.mxu0 %v1293
    %1779 = vmatprep.subr.bf16.mxu0 %v1298
    %1780 = vmatpush1.bf16.msra.mxu0 %v1297
    %1781 = vmatprep.mubr.bf16.mxu0 %v184
    %1782 = vmatmul.mubr.bf16.gmra.mrb[0].mxu0 %v183
    %v1783 = vpop.f32.mrb[0].mxu0
    %v1784 = vadd.f32 %v452, %v1783
    %v1785 = vpop.f32.mrb[0].mxu0
    %v1786 = vadd.f32 %v456, %v1785
    %v1787 = vpop.f32.mrb[0].mxu0
    %v1788 = vpop.f32.mrb[0].mxu0
    %1789 = vdwg.mxu0
    %1790 = vmatprep.subr.bf16.mxu0 %v1302
    %1791 = vmatpush1.bf16.msra.mxu0 %v1301
    %1792 = vmatprep.subr.bf16.mxu0 %v1306
    %1793 = vmatpush1.bf16.msra.mxu0 %v1305
    %1794 = vmatprep.subr.bf16.mxu0 %v1310
    %1795 = vmatpush1.bf16.msra.mxu0 %v1309
    %1796 = vmatprep.subr.bf16.mxu0 %v1314
    %1797 = vmatpush1.bf16.msra.mxu0 %v1313
    %1798 = vmatprep.subr.bf16.mxu0 %v1318
    %1799 = vmatpush1.bf16.msra.mxu0 %v1317
    %1800 = vmatprep.subr.bf16.mxu0 %v1322
    %1801 = vmatpush1.bf16.msra.mxu0 %v1321
    %1802 = vmatprep.subr.bf16.mxu0 %v1326
    %1803 = vmatpush1.bf16.msra.mxu0 %v1325
    %1804 = vmatprep.subr.bf16.mxu0 %v1330
    %1805 = vmatpush1.bf16.msra.mxu0 %v1329
    %1806 = vmatprep.subr.bf16.mxu0 %v1334
    %1807 = vmatpush1.bf16.msra.mxu0 %v1333
    %1808 = vmatprep.subr.bf16.mxu0 %v1338
    %1809 = vmatpush1.bf16.msra.mxu0 %v1337
    %1810 = vmatprep.subr.bf16.mxu0 %v1342
    %1811 = vmatpush1.bf16.msra.mxu0 %v1341
    %1812 = vmatprep.subr.bf16.mxu0 %v1346
    %1813 = vmatpush1.bf16.msra.mxu0 %v1345
    %1814 = vmatprep.subr.bf16.mxu0 %v1350
    %1815 = vmatpush1.bf16.msra.mxu0 %v1349
    %1816 = vmatprep.subr.bf16.mxu0 %v1354
    %1817 = vmatpush1.bf16.msra.mxu0 %v1353
    %1818 = vmatprep.subr.bf16.mxu0 %v1358
    %1819 = vmatpush1.bf16.msra.mxu0 %v1357
    %1820 = vmatprep.subr.bf16.mxu0 %v1362
    %1821 = vmatpush1.bf16.msra.mxu0 %v1361
    %1822 = vmatprep.mubr.bf16.mxu0 %v186
    %1823 = vmatmul.mubr.bf16.gmra.mrb[0].mxu0 %v185
    %v1824 = vpop.f32.mrb[0].mxu0
    %v1825 = vadd.f32 %v1784, %v1824
    %v1826 = vpop.f32.mrb[0].mxu0
    %v1827 = vadd.f32 %v1786, %v1826
    %v1828 = vpop.f32.mrb[0].mxu0
    %v1829 = vpop.f32.mrb[0].mxu0
    %1830 = vdwg.mxu0
    %1831 = vmatprep.subr.bf16.mxu0 %v1366
    %1832 = vmatpush1.bf16.msra.mxu0 %v1365
    %1833 = vmatprep.subr.bf16.mxu0 %v1370
    %1834 = vmatpush1.bf16.msra.mxu0 %v1369
    %1835 = vmatprep.subr.bf16.mxu0 %v1374
    %1836 = vmatpush1.bf16.msra.mxu0 %v1373
    %1837 = vmatprep.subr.bf16.mxu0 %v1378
    %1838 = vmatpush1.bf16.msra.mxu0 %v1377
    %1839 = vmatprep.subr.bf16.mxu0 %v1382
    %1840 = vmatpush1.bf16.msra.mxu0 %v1381
    %1841 = vmatprep.subr.bf16.mxu0 %v1386
    %1842 = vmatpush1.bf16.msra.mxu0 %v1385
    %1843 = vmatprep.subr.bf16.mxu0 %v1390
    %1844 = vmatpush1.bf16.msra.mxu0 %v1389
    %1845 = vmatprep.subr.bf16.mxu0 %v1394
    %1846 = vmatpush1.bf16.msra.mxu0 %v1393
    %1847 = vmatprep.subr.bf16.mxu0 %v1398
    %1848 = vmatpush1.bf16.msra.mxu0 %v1397
    %1849 = vmatprep.subr.bf16.mxu0 %v1402
    %1850 = vmatpush1.bf16.msra.mxu0 %v1401
    %1851 = vmatprep.subr.bf16.mxu0 %v1406
    %1852 = vmatpush1.bf16.msra.mxu0 %v1405
    %1853 = vmatprep.subr.bf16.mxu0 %v1410
    %1854 = vmatpush1.bf16.msra.mxu0 %v1409
    %1855 = vmatprep.subr.bf16.mxu0 %v1414
    %1856 = vmatpush1.bf16.msra.mxu0 %v1413
    %1857 = vmatprep.subr.bf16.mxu0 %v1418
    %1858 = vmatpush1.bf16.msra.mxu0 %v1417
    %1859 = vmatprep.subr.bf16.mxu0 %v1422
    %1860 = vmatpush1.bf16.msra.mxu0 %v1421
    %1861 = vmatprep.subr.bf16.mxu0 %v1426
    %1862 = vmatpush1.bf16.msra.mxu0 %v1425
    %1863 = vmatprep.mubr.bf16.mxu0 %v188
    %1864 = vmatmul.mubr.bf16.gmra.mrb[0].mxu0 %v187
    %v1865 = vpop.f32.mrb[0].mxu0
    %v1866 = vadd.f32 %v1825, %v1865
    %v1867 = vpop.f32.mrb[0].mxu0
    %v1868 = vadd.f32 %v1827, %v1867
    %v1869 = vpop.f32.mrb[0].mxu0
    %v1870 = vpop.f32.mrb[0].mxu0
    %1871 = vdwg.mxu0
    %1872 = vmatprep.subr.bf16.mxu0 %v1430
    %1873 = vmatpush1.bf16.msra.mxu0 %v1429
    %1874 = vmatprep.subr.bf16.mxu0 %v1434
    %1875 = vmatpush1.bf16.msra.mxu0 %v1433
    %1876 = vmatprep.subr.bf16.mxu0 %v1438
    %1877 = vmatpush1.bf16.msra.mxu0 %v1437
    %1878 = vmatprep.subr.bf16.mxu0 %v1442
    %1879 = vmatpush1.bf16.msra.mxu0 %v1441
    %1880 = vmatprep.subr.bf16.mxu0 %v1446
    %1881 = vmatpush1.bf16.msra.mxu0 %v1445
    %1882 = vmatprep.subr.bf16.mxu0 %v1450
    %1883 = vmatpush1.bf16.msra.mxu0 %v1449
    %1884 = vmatprep.subr.bf16.mxu0 %v1454
    %1885 = vmatpush1.bf16.msra.mxu0 %v1453
    %1886 = vmatprep.subr.bf16.mxu0 %v1458
    %1887 = vmatpush1.bf16.msra.mxu0 %v1457
    %1888 = vmatprep.subr.bf16.mxu0 %v1462
    %1889 = vmatpush1.bf16.msra.mxu0 %v1461
    %1890 = vmatprep.subr.bf16.mxu0 %v1466
    %1891 = vmatpush1.bf16.msra.mxu0 %v1465
    %1892 = vmatprep.subr.bf16.mxu0 %v1470
    %1893 = vmatpush1.bf16.msra.mxu0 %v1469
    %1894 = vmatprep.subr.bf16.mxu0 %v1474
    %1895 = vmatpush1.bf16.msra.mxu0 %v1473
    %1896 = vmatprep.subr.bf16.mxu0 %v1478
    %1897 = vmatpush1.bf16.msra.mxu0 %v1477
    %1898 = vmatprep.subr.bf16.mxu0 %v1482
    %1899 = vmatpush1.bf16.msra.mxu0 %v1481
    %1900 = vmatprep.subr.bf16.mxu0 %v1486
    %1901 = vmatpush1.bf16.msra.mxu0 %v1485
    %1902 = vmatprep.subr.bf16.mxu0 %v1490
    %1903 = vmatpush1.bf16.msra.mxu0 %v1489
    %1904 = vmatprep.mubr.bf16.mxu0 %v190
    %1905 = vmatmul.mubr.bf16.gmra.mrb[0].mxu0 %v189
    %v1906 = vpop.f32.mrb[0].mxu0
    %v1907 = vadd.f32 %v1866, %v1906
    %v1908 = vpop.f32.mrb[0].mxu0
    %v1909 = vadd.f32 %v1868, %v1908
    %v1910 = vpop.f32.mrb[0].mxu0
    %v1911 = vpop.f32.mrb[0].mxu0
    %1912 = vdwg.mxu0
    %1913 = vmatprep.subr.bf16.mxu0 %v1240
    %1914 = vmatpush1.bf16.msra.mxu0 %v1239
    %1915 = vmatprep.subr.bf16.mxu0 %v1244
    %1916 = vmatpush1.bf16.msra.mxu0 %v1243
    %1917 = vmatprep.subr.bf16.mxu0 %v1248
    %1918 = vmatpush1.bf16.msra.mxu0 %v1247
    %1919 = vmatprep.subr.bf16.mxu0 %v1252
    %1920 = vmatpush1.bf16.msra.mxu0 %v1251
    %1921 = vmatprep.subr.bf16.mxu0 %v1256
    %1922 = vmatpush1.bf16.msra.mxu0 %v1255
    %1923 = vmatprep.subr.bf16.mxu0 %v1260
    %1924 = vmatpush1.bf16.msra.mxu0 %v1259
    %1925 = vmatprep.subr.bf16.mxu0 %v1264
    %1926 = vmatpush1.bf16.msra.mxu0 %v1263
    %1927 = vmatprep.subr.bf16.mxu0 %v1268
    %1928 = vmatpush1.bf16.msra.mxu0 %v1267
    %1929 = vmatprep.subr.bf16.mxu0 %v1272
    %1930 = vmatpush1.bf16.msra.mxu0 %v1271
    %1931 = vmatprep.subr.bf16.mxu0 %v1276
    %1932 = vmatpush1.bf16.msra.mxu0 %v1275
    %1933 = vmatprep.subr.bf16.mxu0 %v1280
    %1934 = vmatpush1.bf16.msra.mxu0 %v1279
    %1935 = vmatprep.subr.bf16.mxu0 %v1284
    %1936 = vmatpush1.bf16.msra.mxu0 %v1283
    %1937 = vmatprep.subr.bf16.mxu0 %v1288
    %1938 = vmatpush1.bf16.msra.mxu0 %v1287
    %1939 = vmatprep.subr.bf16.mxu0 %v1292
    %1940 = vmatpush1.bf16.msra.mxu0 %v1291
    %1941 = vmatprep.subr.bf16.mxu0 %v1296
    %1942 = vmatpush1.bf16.msra.mxu0 %v1295
    %1943 = vmatprep.subr.bf16.mxu0 %v1300
    %1944 = vmatpush1.bf16.msra.mxu0 %v1299
    %1945 = vmatprep.mubr.bf16.mxu0 %v184
    %1946 = vmatmul.mubr.bf16.gmra.mrb[0].mxu0 %v183
    %v1947 = vpop.f32.mrb[0].mxu0
    %v1948 = vadd.f32 %v460, %v1947
    %v1949 = vpop.f32.mrb[0].mxu0
    %v1950 = vadd.f32 %v464, %v1949
    %v1951 = vpop.f32.mrb[0].mxu0
    %v1952 = vpop.f32.mrb[0].mxu0
    %1953 = vdwg.mxu0
    %1954 = vmatprep.subr.bf16.mxu0 %v1304
    %1955 = vmatpush1.bf16.msra.mxu0 %v1303
    %1956 = vmatprep.subr.bf16.mxu0 %v1308
    %1957 = vmatpush1.bf16.msra.mxu0 %v1307
    %1958 = vmatprep.subr.bf16.mxu0 %v1312
    %1959 = vmatpush1.bf16.msra.mxu0 %v1311
    %1960 = vmatprep.subr.bf16.mxu0 %v1316
    %1961 = vmatpush1.bf16.msra.mxu0 %v1315
    %1962 = vmatprep.subr.bf16.mxu0 %v1320
    %1963 = vmatpush1.bf16.msra.mxu0 %v1319
    %1964 = vmatprep.subr.bf16.mxu0 %v1324
    %1965 = vmatpush1.bf16.msra.mxu0 %v1323
    %1966 = vmatprep.subr.bf16.mxu0 %v1328
    %1967 = vmatpush1.bf16.msra.mxu0 %v1327
    %1968 = vmatprep.subr.bf16.mxu0 %v1332
    %1969 = vmatpush1.bf16.msra.mxu0 %v1331
    %1970 = vmatprep.subr.bf16.mxu0 %v1336
    %1971 = vmatpush1.bf16.msra.mxu0 %v1335
    %1972 = vmatprep.subr.bf16.mxu0 %v1340
    %1973 = vmatpush1.bf16.msra.mxu0 %v1339
    %1974 = vmatprep.subr.bf16.mxu0 %v1344
    %1975 = vmatpush1.bf16.msra.mxu0 %v1343
    %1976 = vmatprep.subr.bf16.mxu0 %v1348
    %1977 = vmatpush1.bf16.msra.mxu0 %v1347
    %1978 = vmatprep.subr.bf16.mxu0 %v1352
    %1979 = vmatpush1.bf16.msra.mxu0 %v1351
    %1980 = vmatprep.subr.bf16.mxu0 %v1356
    %1981 = vmatpush1.bf16.msra.mxu0 %v1355
    %1982 = vmatprep.subr.bf16.mxu0 %v1360
    %1983 = vmatpush1.bf16.msra.mxu0 %v1359
    %1984 = vmatprep.subr.bf16.mxu0 %v1364
    %1985 = vmatpush1.bf16.msra.mxu0 %v1363
    %1986 = vmatprep.mubr.bf16.mxu0 %v186
    %1987 = vmatmul.mubr.bf16.gmra.mrb[0].mxu0 %v185
    %v1988 = vpop.f32.mrb[0].mxu0
    %v1989 = vadd.f32 %v1948, %v1988
    %v1990 = vpop.f32.mrb[0].mxu0
    %v1991 = vadd.f32 %v1950, %v1990
    %v1992 = vpop.f32.mrb[0].mxu0
    %v1993 = vpop.f32.mrb[0].mxu0
    %1994 = vdwg.mxu0
    %1995 = vmatprep.subr.bf16.mxu0 %v1368
    %1996 = vmatpush1.bf16.msra.mxu0 %v1367
    %1997 = vmatprep.subr.bf16.mxu0 %v1372
    %1998 = vmatpush1.bf16.msra.mxu0 %v1371
    %1999 = vmatprep.subr.bf16.mxu0 %v1376
    %2000 = vmatpush1.bf16.msra.mxu0 %v1375
    %2001 = vmatprep.subr.bf16.mxu0 %v1380
    %2002 = vmatpush1.bf16.msra.mxu0 %v1379
    %2003 = vmatprep.subr.bf16.mxu0 %v1384
    %2004 = vmatpush1.bf16.msra.mxu0 %v1383
    %2005 = vmatprep.subr.bf16.mxu0 %v1388
    %2006 = vmatpush1.bf16.msra.mxu0 %v1387
    %2007 = vmatprep.subr.bf16.mxu0 %v1392
    %2008 = vmatpush1.bf16.msra.mxu0 %v1391
    %2009 = vmatprep.subr.bf16.mxu0 %v1396
    %2010 = vmatpush1.bf16.msra.mxu0 %v1395
    %2011 = vmatprep.subr.bf16.mxu0 %v1400
    %2012 = vmatpush1.bf16.msra.mxu0 %v1399
    %2013 = vmatprep.subr.bf16.mxu0 %v1404
    %2014 = vmatpush1.bf16.msra.mxu0 %v1403
    %2015 = vmatprep.subr.bf16.mxu0 %v1408
    %2016 = vmatpush1.bf16.msra.mxu0 %v1407
    %2017 = vmatprep.subr.bf16.mxu0 %v1412
    %2018 = vmatpush1.bf16.msra.mxu0 %v1411
    %2019 = vmatprep.subr.bf16.mxu0 %v1416
    %2020 = vmatpush1.bf16.msra.mxu0 %v1415
    %2021 = vmatprep.subr.bf16.mxu0 %v1420
    %2022 = vmatpush1.bf16.msra.mxu0 %v1419
    %2023 = vmatprep.subr.bf16.mxu0 %v1424
    %2024 = vmatpush1.bf16.msra.mxu0 %v1423
    %2025 = vmatprep.subr.bf16.mxu0 %v1428
    %2026 = vmatpush1.bf16.msra.mxu0 %v1427
    %2027 = vmatprep.mubr.bf16.mxu0 %v188
    %2028 = vmatmul.mubr.bf16.gmra.mrb[0].mxu0 %v187
    %v2029 = vpop.f32.mrb[0].mxu0
    %v2030 = vadd.f32 %v1989, %v2029
    %v2031 = vpop.f32.mrb[0].mxu0
    %v2032 = vadd.f32 %v1991, %v2031
    %v2033 = vpop.f32.mrb[0].mxu0
    %v2034 = vpop.f32.mrb[0].mxu0
    %2035 = vdwg.mxu0
    %2036 = vmatprep.subr.bf16.mxu0 %v1432
    %2037 = vmatpush1.bf16.msra.mxu0 %v1431
    %2038 = vmatprep.subr.bf16.mxu0 %v1436
    %2039 = vmatpush1.bf16.msra.mxu0 %v1435
    %2040 = vmatprep.subr.bf16.mxu0 %v1440
    %2041 = vmatpush1.bf16.msra.mxu0 %v1439
    %2042 = vmatprep.subr.bf16.mxu0 %v1444
    %2043 = vmatpush1.bf16.msra.mxu0 %v1443
    %2044 = vmatprep.subr.bf16.mxu0 %v1448
    %2045 = vmatpush1.bf16.msra.mxu0 %v1447
    %2046 = vmatprep.subr.bf16.mxu0 %v1452
    %2047 = vmatpush1.bf16.msra.mxu0 %v1451
    %2048 = vmatprep.subr.bf16.mxu0 %v1456
    %2049 = vmatpush1.bf16.msra.mxu0 %v1455
    %2050 = vmatprep.subr.bf16.mxu0 %v1460
    %2051 = vmatpush1.bf16.msra.mxu0 %v1459
    %2052 = vmatprep.subr.bf16.mxu0 %v1464
    %2053 = vmatpush1.bf16.msra.mxu0 %v1463
    %2054 = vmatprep.subr.bf16.mxu0 %v1468
    %2055 = vmatpush1.bf16.msra.mxu0 %v1467
    %2056 = vmatprep.subr.bf16.mxu0 %v1472
    %2057 = vmatpush1.bf16.msra.mxu0 %v1471
    %2058 = vmatprep.subr.bf16.mxu0 %v1476
    %2059 = vmatpush1.bf16.msra.mxu0 %v1475
    %2060 = vmatprep.subr.bf16.mxu0 %v1480
    %2061 = vmatpush1.bf16.msra.mxu0 %v1479
    %2062 = vmatprep.subr.bf16.mxu0 %v1484
    %2063 = vmatpush1.bf16.msra.mxu0 %v1483
    %2064 = vmatprep.subr.bf16.mxu0 %v1488
    %2065 = vmatpush1.bf16.msra.mxu0 %v1487
    %2066 = vmatprep.subr.bf16.mxu0 %v1492
    %2067 = vmatpush1.bf16.msra.mxu0 %v1491
    %2068 = vmatprep.mubr.bf16.mxu0 %v190
    %2069 = vmatmul.mubr.bf16.gmra.mrb[0].mxu0 %v189
    %v2070 = vpop.f32.mrb[0].mxu0
    %v2071 = vadd.f32 %v2030, %v2070
    %v2072 = vpop.f32.mrb[0].mxu0
    %v2073 = vadd.f32 %v2032, %v2072
    %v2074 = vpop.f32.mrb[0].mxu0
    %v2075 = vpop.f32.mrb[0].mxu0
    %2076 = vdwg.mxu0
    %v2077 = vmax.f32 %v1907, 0.0
    %v2078 = vmax.f32 %v1909, 0.0
    %v2079 = vmax.f32 %v2071, 0.0
    %v2080 = vmax.f32 %v2073, 0.0
    %v2081 = vpack.c.bf16 %v2077, %v2077
    %v2082 = vpack.c.bf16 %v2078, %v2078
    %v2083 = vpack.c.bf16 %v2079, %v2079
    %v2084 = vpack.c.bf16 %v2080, %v2080
    %v2085 = vld [vmem:[#allocation8] sm:$0xff]
    %v2086 = vld [vmem:[#allocation8 + $0x8] sm:$0xf]
    %v2087 = vld [vmem:[#allocation8 + $0xc] sm:$0xff]
    %v2088 = vld [vmem:[#allocation8 + $0x14] sm:$0xf]
    %v2089 = vld [vmem:[#allocation8 + $0x18] sm:$0xff]
    %v2090 = vld [vmem:[#allocation8 + $0x20] sm:$0xf]
    %v2091 = vld [vmem:[#allocation8 + $0x24] sm:$0xff]
    %v2092 = vld [vmem:[#allocation8 + $0x2c] sm:$0xf]
    %v2093 = vld [vmem:[#allocation8 + $0x30] sm:$0xff]
    %v2094 = vld [vmem:[#allocation8 + $0x38] sm:$0xf]
    %v2095 = vld [vmem:[#allocation8 + $0x3c] sm:$0xff]
    %v2096 = vld [vmem:[#allocation8 + $0x44] sm:$0xf]
    %v2097 = vld [vmem:[#allocation8 + $0x48] sm:$0xff]
    %v2098 = vld [vmem:[#allocation8 + $0x50] sm:$0xf]
    %v2099 = vld [vmem:[#allocation8 + $0x54] sm:$0xff]
    %v2100 = vld [vmem:[#allocation8 + $0x5c] sm:$0xf]
    %v2101 = vld [vmem:[#allocation8 + $0x60] sm:$0xff]
    %v2102 = vld [vmem:[#allocation8 + $0x68] sm:$0xf]
    %v2103 = vld [vmem:[#allocation8 + $0x6c] sm:$0xff]
    %v2104 = vld [vmem:[#allocation8 + $0x74] sm:$0xf]
    %v2105 = vld [vmem:[#allocation8 + $0x78] sm:$0xff]
    %v2106 = vld [vmem:[#allocation8 + $0x80] sm:$0xf]
    %v2107 = vld [vmem:[#allocation8 + $0x84] sm:$0xff]
    %v2108 = vld [vmem:[#allocation8 + $0x8c] sm:$0xf]
    %v2109 = vld [vmem:[#allocation8 + $0x90] sm:$0xff]
    %v2110 = vld [vmem:[#allocation8 + $0x98] sm:$0xf]
    %v2111 = vld [vmem:[#allocation8 + $0x9c] sm:$0xff]
    %v2112 = vld [vmem:[#allocation8 + $0xa4] sm:$0xf]
    %v2113 = vld [vmem:[#allocation8 + $0xa8] sm:$0xff]
    %v2114 = vld [vmem:[#allocation8 + $0xb0] sm:$0xf]
    %v2115 = vld [vmem:[#allocation8 + $0xb4] sm:$0xff]
    %v2116 = vld [vmem:[#allocation8 + $0xbc] sm:$0xf]
    %v2117 = vld [vmem:[#allocation8 + $0xc0] sm:$0xff]
    %v2118 = vld [vmem:[#allocation8 + $0xc8] sm:$0xf]
    %v2119 = vld [vmem:[#allocation8 + $0xcc] sm:$0xff]
    %v2120 = vld [vmem:[#allocation8 + $0xd4] sm:$0xf]
    %v2121 = vld [vmem:[#allocation8 + $0xd8] sm:$0xff]
    %v2122 = vld [vmem:[#allocation8 + $0xe0] sm:$0xf]
    %v2123 = vld [vmem:[#allocation8 + $0xe4] sm:$0xff]
    %v2124 = vld [vmem:[#allocation8 + $0xec] sm:$0xf]
    %v2125 = vld [vmem:[#allocation8 + $0xf0] sm:$0xff]
    %v2126 = vld [vmem:[#allocation8 + $0xf8] sm:$0xf]
    %v2127 = vld [vmem:[#allocation8 + $0xfc] sm:$0xff]
    %v2128 = vld [vmem:[#allocation8 + $0x104] sm:$0xf]
    %v2129 = vld [vmem:[#allocation8 + $0x108] sm:$0xff]
    %v2130 = vld [vmem:[#allocation8 + $0x110] sm:$0xf]
    %v2131 = vld [vmem:[#allocation8 + $0x114] sm:$0xff]
    %v2132 = vld [vmem:[#allocation8 + $0x11c] sm:$0xf]
    %v2133 = vld [vmem:[#allocation8 + $0x120] sm:$0xff]
    %v2134 = vld [vmem:[#allocation8 + $0x128] sm:$0xf]
    %v2135 = vld [vmem:[#allocation8 + $0x12c] sm:$0xff]
    %v2136 = vld [vmem:[#allocation8 + $0x134] sm:$0xf]
    %v2137 = vld [vmem:[#allocation8 + $0x138] sm:$0xff]
    %v2138 = vld [vmem:[#allocation8 + $0x140] sm:$0xf]
    %v2139 = vld [vmem:[#allocation8 + $0x144] sm:$0xff]
    %v2140 = vld [vmem:[#allocation8 + $0x14c] sm:$0xf]
    %v2141 = vld [vmem:[#allocation8 + $0x150] sm:$0xff]
    %v2142 = vld [vmem:[#allocation8 + $0x158] sm:$0xf]
    %v2143 = vld [vmem:[#allocation8 + $0x15c] sm:$0xff]
    %v2144 = vld [vmem:[#allocation8 + $0x164] sm:$0xf]
    %v2145 = vld [vmem:[#allocation8 + $0x168] sm:$0xff]
    %v2146 = vld [vmem:[#allocation8 + $0x170] sm:$0xf]
    %v2147 = vld [vmem:[#allocation8 + $0x174] sm:$0xff]
    %v2148 = vld [vmem:[#allocation8 + $0x17c] sm:$0xf]
    %v2149 = vld [vmem:[#allocation8 + $0x180] sm:$0xff]
    %v2150 = vld [vmem:[#allocation8 + $0x188] sm:$0xf]
    %v2151 = vld [vmem:[#allocation8 + $0x18c] sm:$0xff]
    %v2152 = vld [vmem:[#allocation8 + $0x194] sm:$0xf]
    %v2153 = vld [vmem:[#allocation8 + $0x198] sm:$0xff]
    %v2154 = vld [vmem:[#allocation8 + $0x1a0] sm:$0xf]
    %v2155 = vld [vmem:[#allocation8 + $0x1a4] sm:$0xff]
    %v2156 = vld [vmem:[#allocation8 + $0x1ac] sm:$0xf]
    %v2157 = vld [vmem:[#allocation8 + $0x1b0] sm:$0xff]
    %v2158 = vld [vmem:[#allocation8 + $0x1b8] sm:$0xf]
    %v2159 = vld [vmem:[#allocation8 + $0x1bc] sm:$0xff]
    %v2160 = vld [vmem:[#allocation8 + $0x1c4] sm:$0xf]
    %v2161 = vld [vmem:[#allocation8 + $0x1c8] sm:$0xff]
    %v2162 = vld [vmem:[#allocation8 + $0x1d0] sm:$0xf]
    %v2163 = vld [vmem:[#allocation8 + $0x1d4] sm:$0xff]
    %v2164 = vld [vmem:[#allocation8 + $0x1dc] sm:$0xf]
    %v2165 = vld [vmem:[#allocation8 + $0x1e0] sm:$0xff]
    %v2166 = vld [vmem:[#allocation8 + $0x1e8] sm:$0xf]
    %v2167 = vld [vmem:[#allocation8 + $0x1ec] sm:$0xff]
    %v2168 = vld [vmem:[#allocation8 + $0x1f4] sm:$0xf]
    %v2169 = vld [vmem:[#allocation8 + $0x1f8] sm:$0xff]
    %v2170 = vld [vmem:[#allocation8 + $0x200] sm:$0xf]
    %v2171 = vld [vmem:[#allocation8 + $0x204] sm:$0xff]
    %v2172 = vld [vmem:[#allocation8 + $0x20c] sm:$0xf]
    %v2173 = vld [vmem:[#allocation8 + $0x210] sm:$0xff]
    %v2174 = vld [vmem:[#allocation8 + $0x218] sm:$0xf]
    %v2175 = vld [vmem:[#allocation8 + $0x21c] sm:$0xff]
    %v2176 = vld [vmem:[#allocation8 + $0x224] sm:$0xf]
    %v2177 = vld [vmem:[#allocation8 + $0x228] sm:$0xff]
    %v2178 = vld [vmem:[#allocation8 + $0x230] sm:$0xf]
    %v2179 = vld [vmem:[#allocation8 + $0x234] sm:$0xff]
    %v2180 = vld [vmem:[#allocation8 + $0x23c] sm:$0xf]
    %v2181 = vld [vmem:[#allocation8 + $0x240] sm:$0xff]
    %v2182 = vld [vmem:[#allocation8 + $0x248] sm:$0xf]
    %v2183 = vld [vmem:[#allocation8 + $0x24c] sm:$0xff]
    %v2184 = vld [vmem:[#allocation8 + $0x254] sm:$0xf]
    %v2185 = vld [vmem:[#allocation8 + $0x258] sm:$0xff]
    %v2186 = vld [vmem:[#allocation8 + $0x260] sm:$0xf]
    %v2187 = vld [vmem:[#allocation8 + $0x264] sm:$0xff]
    %v2188 = vld [vmem:[#allocation8 + $0x26c] sm:$0xf]
    %v2189 = vld [vmem:[#allocation8 + $0x270] sm:$0xff]
    %v2190 = vld [vmem:[#allocation8 + $0x278] sm:$0xf]
    %v2191 = vld [vmem:[#allocation8 + $0x27c] sm:$0xff]
    %v2192 = vld [vmem:[#allocation8 + $0x284] sm:$0xf]
    %v2193 = vld [vmem:[#allocation8 + $0x288] sm:$0xff]
    %v2194 = vld [vmem:[#allocation8 + $0x290] sm:$0xf]
    %v2195 = vld [vmem:[#allocation8 + $0x294] sm:$0xff]
    %v2196 = vld [vmem:[#allocation8 + $0x29c] sm:$0xf]
    %v2197 = vld [vmem:[#allocation8 + $0x2a0] sm:$0xff]
    %v2198 = vld [vmem:[#allocation8 + $0x2a8] sm:$0xf]
    %v2199 = vld [vmem:[#allocation8 + $0x2ac] sm:$0xff]
    %v2200 = vld [vmem:[#allocation8 + $0x2b4] sm:$0xf]
    %v2201 = vld [vmem:[#allocation8 + $0x2b8] sm:$0xff]
    %v2202 = vld [vmem:[#allocation8 + $0x2c0] sm:$0xf]
    %v2203 = vld [vmem:[#allocation8 + $0x2c4] sm:$0xff]
    %v2204 = vld [vmem:[#allocation8 + $0x2cc] sm:$0xf]
    %v2205 = vld [vmem:[#allocation8 + $0x2d0] sm:$0xff]
    %v2206 = vld [vmem:[#allocation8 + $0x2d8] sm:$0xf]
    %v2207 = vld [vmem:[#allocation8 + $0x2dc] sm:$0xff]
    %v2208 = vld [vmem:[#allocation8 + $0x2e4] sm:$0xf]
    %v2209 = vld [vmem:[#allocation8 + $0x2e8] sm:$0xff]
    %v2210 = vld [vmem:[#allocation8 + $0x2f0] sm:$0xf]
    %v2211 = vld [vmem:[#allocation8 + $0x2f4] sm:$0xff]
    %v2212 = vld [vmem:[#allocation8 + $0x2fc] sm:$0xf]
    %v2213 = vld [vmem:[%s5] sm:$0x7]
    %v2215 = vlaneseq
    %v2216 = vshrl.u32 %v2215, 7
    %v2217 = vsub.s32 0, %v2216
    %v2218 = vrot.slane %v2213, %v2217
    %v2219 = vlaneseq
    %v2220 = vshrl.u32 %v2219, 7
    %v2221 = vsub.s32 1, %v2220
    %v2222 = vrot.slane %v2213, %v2221
    %v2223 = vlaneseq
    %v2224 = vshrl.u32 %v2223, 7
    %v2225 = vsub.s32 2, %v2224
    %v2226 = vrot.slane %v2213, %v2225
    %v2358 = vunpack.c.l.b16 %v2085
    %v2359 = vunpack.c.h.b16 %v2085
    %v2360 = vunpack.c.l.b16 %v2086
    %v2361 = vunpack.c.l.b16 %v2087
    %v2362 = vunpack.c.h.b16 %v2087
    %v2363 = vunpack.c.l.b16 %v2088
    %v2364 = vunpack.c.l.b16 %v2089
    %v2365 = vunpack.c.h.b16 %v2089
    %v2366 = vunpack.c.l.b16 %v2090
    %v2367 = vunpack.c.l.b16 %v2091
    %v2368 = vunpack.c.h.b16 %v2091
    %v2369 = vunpack.c.l.b16 %v2092
    %v2370 = vunpack.c.l.b16 %v2093
    %v2371 = vunpack.c.h.b16 %v2093
    %v2372 = vunpack.c.l.b16 %v2094
    %v2373 = vunpack.c.l.b16 %v2095
    %v2374 = vunpack.c.h.b16 %v2095
    %v2375 = vunpack.c.l.b16 %v2096
    %v2376 = vunpack.c.l.b16 %v2097
    %v2377 = vunpack.c.h.b16 %v2097
    %v2378 = vunpack.c.l.b16 %v2098
    %v2379 = vunpack.c.l.b16 %v2099
    %v2380 = vunpack.c.h.b16 %v2099
    %v2381 = vunpack.c.l.b16 %v2100
    %v2382 = vunpack.c.l.b16 %v2101
    %v2383 = vunpack.c.h.b16 %v2101
    %v2384 = vunpack.c.l.b16 %v2102
    %v2385 = vunpack.c.l.b16 %v2103
    %v2386 = vunpack.c.h.b16 %v2103
    %v2387 = vunpack.c.l.b16 %v2104
    %v2388 = vunpack.c.l.b16 %v2105
    %v2389 = vunpack.c.h.b16 %v2105
    %v2390 = vunpack.c.l.b16 %v2106
    %v2391 = vunpack.c.l.b16 %v2107
    %v2392 = vunpack.c.h.b16 %v2107
    %v2393 = vunpack.c.l.b16 %v2108
    %v2394 = vunpack.c.l.b16 %v2109
    %v2395 = vunpack.c.h.b16 %v2109
    %v2396 = vunpack.c.l.b16 %v2110
    %v2397 = vunpack.c.l.b16 %v2111
    %v2398 = vunpack.c.h.b16 %v2111
    %v2399 = vunpack.c.l.b16 %v2112
    %v2400 = vunpack.c.l.b16 %v2113
    %v2401 = vunpack.c.h.b16 %v2113
    %v2402 = vunpack.c.l.b16 %v2114
    %v2403 = vunpack.c.l.b16 %v2115
    %v2404 = vunpack.c.h.b16 %v2115
    %v2405 = vunpack.c.l.b16 %v2116
    %v2406 = vunpack.c.l.b16 %v2117
    %v2407 = vunpack.c.h.b16 %v2117
    %v2408 = vunpack.c.l.b16 %v2118
    %v2409 = vunpack.c.l.b16 %v2119
    %v2410 = vunpack.c.h.b16 %v2119
    %v2411 = vunpack.c.l.b16 %v2120
    %v2412 = vunpack.c.l.b16 %v2121
    %v2413 = vunpack.c.h.b16 %v2121
    %v2414 = vunpack.c.l.b16 %v2122
    %v2415 = vunpack.c.l.b16 %v2123
    %v2416 = vunpack.c.h.b16 %v2123
    %v2417 = vunpack.c.l.b16 %v2124
    %v2418 = vunpack.c.l.b16 %v2125
    %v2419 = vunpack.c.h.b16 %v2125
    %v2420 = vunpack.c.l.b16 %v2126
    %v2421 = vunpack.c.l.b16 %v2127
    %v2422 = vunpack.c.h.b16 %v2127
    %v2423 = vunpack.c.l.b16 %v2128
    %v2424 = vunpack.c.l.b16 %v2129
    %v2425 = vunpack.c.h.b16 %v2129
    %v2426 = vunpack.c.l.b16 %v2130
    %v2427 = vunpack.c.l.b16 %v2131
    %v2428 = vunpack.c.h.b16 %v2131
    %v2429 = vunpack.c.l.b16 %v2132
    %v2430 = vunpack.c.l.b16 %v2133
    %v2431 = vunpack.c.h.b16 %v2133
    %v2432 = vunpack.c.l.b16 %v2134
    %v2433 = vunpack.c.l.b16 %v2135
    %v2434 = vunpack.c.h.b16 %v2135
    %v2435 = vunpack.c.l.b16 %v2136
    %v2436 = vunpack.c.l.b16 %v2137
    %v2437 = vunpack.c.h.b16 %v2137
    %v2438 = vunpack.c.l.b16 %v2138
    %v2439 = vunpack.c.l.b16 %v2139
    %v2440 = vunpack.c.h.b16 %v2139
    %v2441 = vunpack.c.l.b16 %v2140
    %v2442 = vunpack.c.l.b16 %v2141
    %v2443 = vunpack.c.h.b16 %v2141
    %v2444 = vunpack.c.l.b16 %v2142
    %v2445 = vunpack.c.l.b16 %v2143
    %v2446 = vunpack.c.h.b16 %v2143
    %v2447 = vunpack.c.l.b16 %v2144
    %v2448 = vunpack.c.l.b16 %v2145
    %v2449 = vunpack.c.h.b16 %v2145
    %v2450 = vunpack.c.l.b16 %v2146
    %v2451 = vunpack.c.l.b16 %v2147
    %v2452 = vunpack.c.h.b16 %v2147
    %v2453 = vunpack.c.l.b16 %v2148
    %v2454 = vunpack.c.l.b16 %v2149
    %v2455 = vunpack.c.h.b16 %v2149
    %v2456 = vunpack.c.l.b16 %v2150
    %v2457 = vunpack.c.l.b16 %v2151
    %v2458 = vunpack.c.h.b16 %v2151
    %v2459 = vunpack.c.l.b16 %v2152
    %v2460 = vunpack.c.l.b16 %v2153
    %v2461 = vunpack.c.h.b16 %v2153
    %v2462 = vunpack.c.l.b16 %v2154
    %v2463 = vunpack.c.l.b16 %v2155
    %v2464 = vunpack.c.h.b16 %v2155
    %v2465 = vunpack.c.l.b16 %v2156
    %v2466 = vunpack.c.l.b16 %v2157
    %v2467 = vunpack.c.h.b16 %v2157
    %v2468 = vunpack.c.l.b16 %v2158
    %v2469 = vunpack.c.l.b16 %v2159
    %v2470 = vunpack.c.h.b16 %v2159
    %v2471 = vunpack.c.l.b16 %v2160
    %v2472 = vunpack.c.l.b16 %v2161
    %v2473 = vunpack.c.h.b16 %v2161
    %v2474 = vunpack.c.l.b16 %v2162
    %v2475 = vunpack.c.l.b16 %v2163
    %v2476 = vunpack.c.h.b16 %v2163
    %v2477 = vunpack.c.l.b16 %v2164
    %v2478 = vunpack.c.l.b16 %v2165
    %v2479 = vunpack.c.h.b16 %v2165
    %v2480 = vunpack.c.l.b16 %v2166
    %v2481 = vunpack.c.l.b16 %v2167
    %v2482 = vunpack.c.h.b16 %v2167
    %v2483 = vunpack.c.l.b16 %v2168
    %v2484 = vunpack.c.l.b16 %v2169
    %v2485 = vunpack.c.h.b16 %v2169
    %v2486 = vunpack.c.l.b16 %v2170
    %v2487 = vunpack.c.l.b16 %v2171
    %v2488 = vunpack.c.h.b16 %v2171
    %v2489 = vunpack.c.l.b16 %v2172
    %v2490 = vunpack.c.l.b16 %v2173
    %v2491 = vunpack.c.h.b16 %v2173
    %v2492 = vunpack.c.l.b16 %v2174
    %v2493 = vunpack.c.l.b16 %v2175
    %v2494 = vunpack.c.h.b16 %v2175
    %v2495 = vunpack.c.l.b16 %v2176
    %v2496 = vunpack.c.l.b16 %v2177
    %v2497 = vunpack.c.h.b16 %v2177
    %v2498 = vunpack.c.l.b16 %v2178
    %v2499 = vunpack.c.l.b16 %v2179
    %v2500 = vunpack.c.h.b16 %v2179
    %v2501 = vunpack.c.l.b16 %v2180
    %v2502 = vunpack.c.l.b16 %v2181
    %v2503 = vunpack.c.h.b16 %v2181
    %v2504 = vunpack.c.l.b16 %v2182
    %v2505 = vunpack.c.l.b16 %v2183
    %v2506 = vunpack.c.h.b16 %v2183
    %v2507 = vunpack.c.l.b16 %v2184
    %v2508 = vunpack.c.l.b16 %v2185
    %v2509 = vunpack.c.h.b16 %v2185
    %v2510 = vunpack.c.l.b16 %v2186
    %v2511 = vunpack.c.l.b16 %v2187
    %v2512 = vunpack.c.h.b16 %v2187
    %v2513 = vunpack.c.l.b16 %v2188
    %v2514 = vunpack.c.l.b16 %v2189
    %v2515 = vunpack.c.h.b16 %v2189
    %v2516 = vunpack.c.l.b16 %v2190
    %v2517 = vunpack.c.l.b16 %v2191
    %v2518 = vunpack.c.h.b16 %v2191
    %v2519 = vunpack.c.l.b16 %v2192
    %v2520 = vunpack.c.l.b16 %v2193
    %v2521 = vunpack.c.h.b16 %v2193
    %v2522 = vunpack.c.l.b16 %v2194
    %v2523 = vunpack.c.l.b16 %v2195
    %v2524 = vunpack.c.h.b16 %v2195
    %v2525 = vunpack.c.l.b16 %v2196
    %v2526 = vunpack.c.l.b16 %v2197
    %v2527 = vunpack.c.h.b16 %v2197
    %v2528 = vunpack.c.l.b16 %v2198
    %v2529 = vunpack.c.l.b16 %v2199
    %v2530 = vunpack.c.h.b16 %v2199
    %v2531 = vunpack.c.l.b16 %v2200
    %v2532 = vunpack.c.l.b16 %v2201
    %v2533 = vunpack.c.h.b16 %v2201
    %v2534 = vunpack.c.l.b16 %v2202
    %v2535 = vunpack.c.l.b16 %v2203
    %v2536 = vunpack.c.h.b16 %v2203
    %v2537 = vunpack.c.l.b16 %v2204
    %v2538 = vunpack.c.l.b16 %v2205
    %v2539 = vunpack.c.h.b16 %v2205
    %v2540 = vunpack.c.l.b16 %v2206
    %v2541 = vunpack.c.l.b16 %v2207
    %v2542 = vunpack.c.h.b16 %v2207
    %v2543 = vunpack.c.l.b16 %v2208
    %v2544 = vunpack.c.l.b16 %v2209
    %v2545 = vunpack.c.h.b16 %v2209
    %v2546 = vunpack.c.l.b16 %v2210
    %v2547 = vunpack.c.l.b16 %v2211
    %v2548 = vunpack.c.h.b16 %v2211
    %v2549 = vunpack.c.l.b16 %v2212
    %v2550 = vpack.c.b16 %v2361, %v2358
    %v2551 = vpack.c.b16 %v2362, %v2359
    %v2552 = vpack.c.b16 %v2363, %v2360
    %v2553 = vpack.c.b16 %v2367, %v2364
    %v2554 = vpack.c.b16 %v2368, %v2365
    %v2555 = vpack.c.b16 %v2369, %v2366
    %v2556 = vpack.c.b16 %v2373, %v2370
    %v2557 = vpack.c.b16 %v2374, %v2371
    %v2558 = vpack.c.b16 %v2375, %v2372
    %v2559 = vpack.c.b16 %v2379, %v2376
    %v2560 = vpack.c.b16 %v2380, %v2377
    %v2561 = vpack.c.b16 %v2381, %v2378
    %v2562 = vpack.c.b16 %v2385, %v2382
    %v2563 = vpack.c.b16 %v2386, %v2383
    %v2564 = vpack.c.b16 %v2387, %v2384
    %v2565 = vpack.c.b16 %v2391, %v2388
    %v2566 = vpack.c.b16 %v2392, %v2389
    %v2567 = vpack.c.b16 %v2393, %v2390
    %v2568 = vpack.c.b16 %v2397, %v2394
    %v2569 = vpack.c.b16 %v2398, %v2395
    %v2570 = vpack.c.b16 %v2399, %v2396
    %v2571 = vpack.c.b16 %v2403, %v2400
    %v2572 = vpack.c.b16 %v2404, %v2401
    %v2573 = vpack.c.b16 %v2405, %v2402
    %v2574 = vpack.c.b16 %v2409, %v2406
    %v2575 = vpack.c.b16 %v2410, %v2407
    %v2576 = vpack.c.b16 %v2411, %v2408
    %v2577 = vpack.c.b16 %v2415, %v2412
    %v2578 = vpack.c.b16 %v2416, %v2413
    %v2579 = vpack.c.b16 %v2417, %v2414
    %v2580 = vpack.c.b16 %v2421, %v2418
    %v2581 = vpack.c.b16 %v2422, %v2419
    %v2582 = vpack.c.b16 %v2423, %v2420
    %v2583 = vpack.c.b16 %v2427, %v2424
    %v2584 = vpack.c.b16 %v2428, %v2425
    %v2585 = vpack.c.b16 %v2429, %v2426
    %v2586 = vpack.c.b16 %v2433, %v2430
    %v2587 = vpack.c.b16 %v2434, %v2431
    %v2588 = vpack.c.b16 %v2435, %v2432
    %v2589 = vpack.c.b16 %v2439, %v2436
    %v2590 = vpack.c.b16 %v2440, %v2437
    %v2591 = vpack.c.b16 %v2441, %v2438
    %v2592 = vpack.c.b16 %v2445, %v2442
    %v2593 = vpack.c.b16 %v2446, %v2443
    %v2594 = vpack.c.b16 %v2447, %v2444
    %v2595 = vpack.c.b16 %v2451, %v2448
    %v2596 = vpack.c.b16 %v2452, %v2449
    %v2597 = vpack.c.b16 %v2453, %v2450
    %v2598 = vpack.c.b16 %v2457, %v2454
    %v2599 = vpack.c.b16 %v2458, %v2455
    %v2600 = vpack.c.b16 %v2459, %v2456
    %v2601 = vpack.c.b16 %v2463, %v2460
    %v2602 = vpack.c.b16 %v2464, %v2461
    %v2603 = vpack.c.b16 %v2465, %v2462
    %v2604 = vpack.c.b16 %v2469, %v2466
    %v2605 = vpack.c.b16 %v2470, %v2467
    %v2606 = vpack.c.b16 %v2471, %v2468
    %v2607 = vpack.c.b16 %v2475, %v2472
    %v2608 = vpack.c.b16 %v2476, %v2473
    %v2609 = vpack.c.b16 %v2477, %v2474
    %v2610 = vpack.c.b16 %v2481, %v2478
    %v2611 = vpack.c.b16 %v2482, %v2479
    %v2612 = vpack.c.b16 %v2483, %v2480
    %v2613 = vpack.c.b16 %v2487, %v2484
    %v2614 = vpack.c.b16 %v2488, %v2485
    %v2615 = vpack.c.b16 %v2489, %v2486
    %v2616 = vpack.c.b16 %v2493, %v2490
    %v2617 = vpack.c.b16 %v2494, %v2491
    %v2618 = vpack.c.b16 %v2495, %v2492
    %v2619 = vpack.c.b16 %v2499, %v2496
    %v2620 = vpack.c.b16 %v2500, %v2497
    %v2621 = vpack.c.b16 %v2501, %v2498
    %v2622 = vpack.c.b16 %v2505, %v2502
    %v2623 = vpack.c.b16 %v2506, %v2503
    %v2624 = vpack.c.b16 %v2507, %v2504
    %v2625 = vpack.c.b16 %v2511, %v2508
    %v2626 = vpack.c.b16 %v2512, %v2509
    %v2627 = vpack.c.b16 %v2513, %v2510
    %v2628 = vpack.c.b16 %v2517, %v2514
    %v2629 = vpack.c.b16 %v2518, %v2515
    %v2630 = vpack.c.b16 %v2519, %v2516
    %v2631 = vpack.c.b16 %v2523, %v2520
    %v2632 = vpack.c.b16 %v2524, %v2521
    %v2633 = vpack.c.b16 %v2525, %v2522
    %v2634 = vpack.c.b16 %v2529, %v2526
    %v2635 = vpack.c.b16 %v2530, %v2527
    %v2636 = vpack.c.b16 %v2531, %v2528
    %v2637 = vpack.c.b16 %v2535, %v2532
    %v2638 = vpack.c.b16 %v2536, %v2533
    %v2639 = vpack.c.b16 %v2537, %v2534
    %v2640 = vpack.c.b16 %v2541, %v2538
    %v2641 = vpack.c.b16 %v2542, %v2539
    %v2642 = vpack.c.b16 %v2543, %v2540
    %v2643 = vpack.c.b16 %v2547, %v2544
    %v2644 = vpack.c.b16 %v2548, %v2545
    %v2645 = vpack.c.b16 %v2549, %v2546
    %2742 = vmatprep.subr.bf16.mxu0 %v2551
    %2743 = vmatpush1.bf16.msra.mxu0 %v2550
    %2744 = vmatprep.subr.bf16.mxu0 %v2554
    %2745 = vmatpush1.bf16.msra.mxu0 %v2553
    %2746 = vmatprep.subr.bf16.mxu0 %v2557
    %2747 = vmatpush1.bf16.msra.mxu0 %v2556
    %2748 = vmatprep.subr.bf16.mxu0 %v2560
    %2749 = vmatpush1.bf16.msra.mxu0 %v2559
    %2750 = vmatprep.subr.bf16.mxu0 %v2563
    %2751 = vmatpush1.bf16.msra.mxu0 %v2562
    %2752 = vmatprep.subr.bf16.mxu0 %v2566
    %2753 = vmatpush1.bf16.msra.mxu0 %v2565
    %2754 = vmatprep.subr.bf16.mxu0 %v2569
    %2755 = vmatpush1.bf16.msra.mxu0 %v2568
    %2756 = vmatprep.subr.bf16.mxu0 %v2572
    %2757 = vmatpush1.bf16.msra.mxu0 %v2571
    %2758 = vmatprep.subr.bf16.mxu0 %v2575
    %2759 = vmatpush1.bf16.msra.mxu0 %v2574
    %2760 = vmatprep.subr.bf16.mxu0 %v2578
    %2761 = vmatpush1.bf16.msra.mxu0 %v2577
    %2762 = vmatprep.subr.bf16.mxu0 %v2581
    %2763 = vmatpush1.bf16.msra.mxu0 %v2580
    %2764 = vmatprep.subr.bf16.mxu0 %v2584
    %2765 = vmatpush1.bf16.msra.mxu0 %v2583
    %2766 = vmatprep.subr.bf16.mxu0 %v2587
    %2767 = vmatpush1.bf16.msra.mxu0 %v2586
    %2768 = vmatprep.subr.bf16.mxu0 %v2590
    %2769 = vmatpush1.bf16.msra.mxu0 %v2589
    %2770 = vmatprep.subr.bf16.mxu0 %v2593
    %2771 = vmatpush1.bf16.msra.mxu0 %v2592
    %2772 = vmatprep.subr.bf16.mxu0 %v2596
    %2773 = vmatpush1.bf16.msra.mxu0 %v2595
    %2774 = vmatprep.mubr.bf16.mxu0 %v2082
    %2775 = vmatmul.mubr.bf16.gmra.mrb[0].mxu0 %v2081
    %v2776 = vpop.f32.mrb[0].mxu0
    %v2777 = vadd.f32 %v2218, %v2776
    %v2778 = vpop.f32.mrb[0].mxu0
    %v2779 = vadd.f32 %v2222, %v2778
    %v2780 = vpop.f32.mrb[0].mxu0
    %v2781 = vpop.f32.mrb[0].mxu0
    %2782 = vdwg.mxu0
    %2783 = vmatprep.subr.bf16.mxu0 %v2599
    %2784 = vmatpush1.bf16.msra.mxu0 %v2598
    %2785 = vmatprep.subr.bf16.mxu0 %v2602
    %2786 = vmatpush1.bf16.msra.mxu0 %v2601
    %2787 = vmatprep.subr.bf16.mxu0 %v2605
    %2788 = vmatpush1.bf16.msra.mxu0 %v2604
    %2789 = vmatprep.subr.bf16.mxu0 %v2608
    %2790 = vmatpush1.bf16.msra.mxu0 %v2607
    %2791 = vmatprep.subr.bf16.mxu0 %v2611
    %2792 = vmatpush1.bf16.msra.mxu0 %v2610
    %2793 = vmatprep.subr.bf16.mxu0 %v2614
    %2794 = vmatpush1.bf16.msra.mxu0 %v2613
    %2795 = vmatprep.subr.bf16.mxu0 %v2617
    %2796 = vmatpush1.bf16.msra.mxu0 %v2616
    %2797 = vmatprep.subr.bf16.mxu0 %v2620
    %2798 = vmatpush1.bf16.msra.mxu0 %v2619
    %2799 = vmatprep.subr.bf16.mxu0 %v2623
    %2800 = vmatpush1.bf16.msra.mxu0 %v2622
    %2801 = vmatprep.subr.bf16.mxu0 %v2626
    %2802 = vmatpush1.bf16.msra.mxu0 %v2625
    %2803 = vmatprep.subr.bf16.mxu0 %v2629
    %2804 = vmatpush1.bf16.msra.mxu0 %v2628
    %2805 = vmatprep.subr.bf16.mxu0 %v2632
    %2806 = vmatpush1.bf16.msra.mxu0 %v2631
    %2807 = vmatprep.subr.bf16.mxu0 %v2635
    %2808 = vmatpush1.bf16.msra.mxu0 %v2634
    %2809 = vmatprep.subr.bf16.mxu0 %v2638
    %2810 = vmatpush1.bf16.msra.mxu0 %v2637
    %2811 = vmatprep.subr.bf16.mxu0 %v2641
    %2812 = vmatpush1.bf16.msra.mxu0 %v2640
    %2813 = vmatprep.subr.bf16.mxu0 %v2644
    %2814 = vmatpush1.bf16.msra.mxu0 %v2643
    %2815 = vmatprep.mubr.bf16.mxu0 %v2084
    %2816 = vmatmul.mubr.bf16.gmra.mrb[0].mxu0 %v2083
    %v2817 = vpop.f32.mrb[0].mxu0
    %v2818 = vadd.f32 %v2777, %v2817
    %v2819 = vpop.f32.mrb[0].mxu0
    %v2820 = vadd.f32 %v2779, %v2819
    %v2821 = vpop.f32.mrb[0].mxu0
    %v2822 = vpop.f32.mrb[0].mxu0
    %2823 = vdwg.mxu0
    %2824 = vmatprep.subr.bf16.mxu0 0
    %2825 = vmatpush1.bf16.msra.mxu0 %v2552
    %2826 = vmatprep.subr.bf16.mxu0 0
    %2827 = vmatpush1.bf16.msra.mxu0 %v2555
    %2828 = vmatprep.subr.bf16.mxu0 0
    %2829 = vmatpush1.bf16.msra.mxu0 %v2558
    %2830 = vmatprep.subr.bf16.mxu0 0
    %2831 = vmatpush1.bf16.msra.mxu0 %v2561
    %2832 = vmatprep.subr.bf16.mxu0 0
    %2833 = vmatpush1.bf16.msra.mxu0 %v2564
    %2834 = vmatprep.subr.bf16.mxu0 0
    %2835 = vmatpush1.bf16.msra.mxu0 %v2567
    %2836 = vmatprep.subr.bf16.mxu0 0
    %2837 = vmatpush1.bf16.msra.mxu0 %v2570
    %2838 = vmatprep.subr.bf16.mxu0 0
    %2839 = vmatpush1.bf16.msra.mxu0 %v2573
    %2840 = vmatprep.subr.bf16.mxu0 0
    %2841 = vmatpush1.bf16.msra.mxu0 %v2576
    %2842 = vmatprep.subr.bf16.mxu0 0
    %2843 = vmatpush1.bf16.msra.mxu0 %v2579
    %2844 = vmatprep.subr.bf16.mxu0 0
    %2845 = vmatpush1.bf16.msra.mxu0 %v2582
    %2846 = vmatprep.subr.bf16.mxu0 0
    %2847 = vmatpush1.bf16.msra.mxu0 %v2585
    %2848 = vmatprep.subr.bf16.mxu0 0
    %2849 = vmatpush1.bf16.msra.mxu0 %v2588
    %2850 = vmatprep.subr.bf16.mxu0 0
    %2851 = vmatpush1.bf16.msra.mxu0 %v2591
    %2852 = vmatprep.subr.bf16.mxu0 0
    %2853 = vmatpush1.bf16.msra.mxu0 %v2594
    %2854 = vmatprep.subr.bf16.mxu0 0
    %2855 = vmatpush1.bf16.msra.mxu0 %v2597
    %2856 = vmatprep.mubr.bf16.mxu0 %v2082
    %2857 = vmatmul.mubr.bf16.gmra.mrb[0].mxu0 %v2081
    %v2858 = vpop.f32.mrb[0].mxu0
    %v2859 = vadd.f32 %v2226, %v2858
    %v2860 = vpop.f32.mrb[0].mxu0
    %v2861 = vpop.f32.mrb[0].mxu0
    %v2862 = vpop.f32.mrb[0].mxu0
    %2863 = vdwg.mxu0
    %2864 = vmatprep.subr.bf16.mxu0 0
    %2865 = vmatpush1.bf16.msra.mxu0 %v2600
    %2866 = vmatprep.subr.bf16.mxu0 0
    %2867 = vmatpush1.bf16.msra.mxu0 %v2603
    %2868 = vmatprep.subr.bf16.mxu0 0
    %2869 = vmatpush1.bf16.msra.mxu0 %v2606
    %2870 = vmatprep.subr.bf16.mxu0 0
    %2871 = vmatpush1.bf16.msra.mxu0 %v2609
    %2872 = vmatprep.subr.bf16.mxu0 0
    %2873 = vmatpush1.bf16.msra.mxu0 %v2612
    %2874 = vmatprep.subr.bf16.mxu0 0
    %2875 = vmatpush1.bf16.msra.mxu0 %v2615
    %2876 = vmatprep.subr.bf16.mxu0 0
    %2877 = vmatpush1.bf16.msra.mxu0 %v2618
    %2878 = vmatprep.subr.bf16.mxu0 0
    %2879 = vmatpush1.bf16.msra.mxu0 %v2621
    %2880 = vmatprep.subr.bf16.mxu0 0
    %2881 = vmatpush1.bf16.msra.mxu0 %v2624
    %2882 = vmatprep.subr.bf16.mxu0 0
    %2883 = vmatpush1.bf16.msra.mxu0 %v2627
    %2884 = vmatprep.subr.bf16.mxu0 0
    %2885 = vmatpush1.bf16.msra.mxu0 %v2630
    %2886 = vmatprep.subr.bf16.mxu0 0
    %2887 = vmatpush1.bf16.msra.mxu0 %v2633
    %2888 = vmatprep.subr.bf16.mxu0 0
    %2889 = vmatpush1.bf16.msra.mxu0 %v2636
    %2890 = vmatprep.subr.bf16.mxu0 0
    %2891 = vmatpush1.bf16.msra.mxu0 %v2639
    %2892 = vmatprep.subr.bf16.mxu0 0
    %2893 = vmatpush1.bf16.msra.mxu0 %v2642
    %2894 = vmatprep.subr.bf16.mxu0 0
    %2895 = vmatpush1.bf16.msra.mxu0 %v2645
    %2896 = vmatprep.mubr.bf16.mxu0 %v2084
    %2897 = vmatmul.mubr.bf16.gmra.mrb[0].mxu0 %v2083
    %v2898 = vpop.f32.mrb[0].mxu0
    %v2899 = vadd.f32 %v2859, %v2898
    %v2900 = vpop.f32.mrb[0].mxu0
    %v2901 = vpop.f32.mrb[0].mxu0
    %v2902 = vpop.f32.mrb[0].mxu0
    %2903 = vdwg.mxu0
    %v2904 = vmax.f32 %v2818, 0.0
    %v2905 = vmax.f32 %v2820, 0.0
    %v2906 = vmax.f32 %v2899, 0.0
    %v2907 = vpack.c.bf16 %v2904, %v2904
    %v2908 = vpack.c.bf16 %v2905, %v2905
    %v2909 = vpack.c.bf16 %v2906, %v2906
    %v2910 = vld [vmem:[#allocation9] sm:$0xf]
    %v2911 = vld [vmem:[#allocation9 + $0x4] sm:$0xf]
    %v2912 = vld [vmem:[#allocation9 + $0x8] sm:$0xf]
    %v2913 = vld [vmem:[#allocation9 + $0xc] sm:$0xf]
    %v2914 = vld [vmem:[#allocation9 + $0x10] sm:$0xf]
    %v2915 = vld [vmem:[#allocation9 + $0x14] sm:$0xf]
    %v2916 = vld [vmem:[#allocation9 + $0x18] sm:$0xf]
    %v2917 = vld [vmem:[#allocation9 + $0x1c] sm:$0xf]
    %v2918 = vld [vmem:[#allocation9 + $0x20] sm:$0xf]
    %v2919 = vld [vmem:[#allocation9 + $0x24] sm:$0xf]
    %v2920 = vld [vmem:[#allocation9 + $0x28] sm:$0xf]
    %v2921 = vld [vmem:[#allocation9 + $0x2c] sm:$0xf]
    %v2922 = vld [vmem:[#allocation9 + $0x30] sm:$0xf]
    %v2923 = vld [vmem:[#allocation9 + $0x34] sm:$0xf]
    %v2924 = vld [vmem:[#allocation9 + $0x38] sm:$0xf]
    %v2925 = vld [vmem:[#allocation9 + $0x3c] sm:$0xf]
    %v2926 = vld [vmem:[#allocation9 + $0x40] sm:$0xf]
    %v2927 = vld [vmem:[#allocation9 + $0x44] sm:$0xf]
    %v2928 = vld [vmem:[#allocation9 + $0x48] sm:$0xf]
    %v2929 = vld [vmem:[#allocation9 + $0x4c] sm:$0xf]
    %v2930 = vld [vmem:[#allocation9 + $0x50] sm:$0xf]
    %v2931 = vld [vmem:[#allocation9 + $0x54] sm:$0xf]
    %v2932 = vld [vmem:[#allocation9 + $0x58] sm:$0xf]
    %v2933 = vld [vmem:[#allocation9 + $0x5c] sm:$0xf]
    %v2934 = vld [vmem:[#allocation9 + $0x60] sm:$0xf]
    %v2935 = vld [vmem:[#allocation9 + $0x64] sm:$0xf]
    %v2936 = vld [vmem:[#allocation9 + $0x68] sm:$0xf]
    %v2937 = vld [vmem:[#allocation9 + $0x6c] sm:$0xf]
    %v2938 = vld [vmem:[#allocation9 + $0x70] sm:$0xf]
    %v2939 = vld [vmem:[#allocation9 + $0x74] sm:$0xf]
    %v2940 = vld [vmem:[#allocation9 + $0x78] sm:$0xf]
    %v2941 = vld [vmem:[#allocation9 + $0x7c] sm:$0xf]
    %v2942 = vld [vmem:[#allocation9 + $0x80] sm:$0xf]
    %v2943 = vld [vmem:[#allocation9 + $0x84] sm:$0xf]
    %v2944 = vld [vmem:[#allocation9 + $0x88] sm:$0xf]
    %v2945 = vld [vmem:[#allocation9 + $0x8c] sm:$0xf]
    %v2946 = vld [vmem:[#allocation9 + $0x90] sm:$0xf]
    %v2947 = vld [vmem:[#allocation9 + $0x94] sm:$0xf]
    %v2948 = vld [vmem:[#allocation9 + $0x98] sm:$0xf]
    %v2949 = vld [vmem:[#allocation9 + $0x9c] sm:$0xf]
    %v2950 = vld [vmem:[#allocation9 + $0xa0] sm:$0xf]
    %v2951 = vld [vmem:[#allocation9 + $0xa4] sm:$0xf]
    %v2952 = vld [vmem:[#allocation9 + $0xa8] sm:$0xf]
    %v2953 = vld [vmem:[#allocation9 + $0xac] sm:$0xf]
    %v2954 = vld [vmem:[#allocation9 + $0xb0] sm:$0xf]
    %v2955 = vld [vmem:[#allocation9 + $0xb4] sm:$0xf]
    %v2956 = vld [vmem:[#allocation9 + $0xb8] sm:$0xf]
    %v2957 = vld [vmem:[#allocation9 + $0xbc] sm:$0xf]
    %v2958 = vld [vmem:[%s7] sm:$0x1]
    %v2960 = vlaneseq
    %v2961 = vshrl.u32 %v2960, 7
    %v2962 = vsub.s32 0, %v2961
    %v2963 = vrot.slane %v2958, %v2962
    %v3013 = vunpack.c.l.b16 %v2910
    %v3014 = vunpack.c.l.b16 %v2911
    %v3015 = vunpack.c.l.b16 %v2912
    %v3016 = vunpack.c.l.b16 %v2913
    %v3017 = vunpack.c.l.b16 %v2914
    %v3018 = vunpack.c.l.b16 %v2915
    %v3019 = vunpack.c.l.b16 %v2916
    %v3020 = vunpack.c.l.b16 %v2917
    %v3021 = vunpack.c.l.b16 %v2918
    %v3022 = vunpack.c.l.b16 %v2919
    %v3023 = vunpack.c.l.b16 %v2920
    %v3024 = vunpack.c.l.b16 %v2921
    %v3025 = vunpack.c.l.b16 %v2922
    %v3026 = vunpack.c.l.b16 %v2923
    %v3027 = vunpack.c.l.b16 %v2924
    %v3028 = vunpack.c.l.b16 %v2925
    %v3029 = vunpack.c.l.b16 %v2926
    %v3030 = vunpack.c.l.b16 %v2927
    %v3031 = vunpack.c.l.b16 %v2928
    %v3032 = vunpack.c.l.b16 %v2929
    %v3033 = vunpack.c.l.b16 %v2930
    %v3034 = vunpack.c.l.b16 %v2931
    %v3035 = vunpack.c.l.b16 %v2932
    %v3036 = vunpack.c.l.b16 %v2933
    %v3037 = vunpack.c.l.b16 %v2934
    %v3038 = vunpack.c.l.b16 %v2935
    %v3039 = vunpack.c.l.b16 %v2936
    %v3040 = vunpack.c.l.b16 %v2937
    %v3041 = vunpack.c.l.b16 %v2938
    %v3042 = vunpack.c.l.b16 %v2939
    %v3043 = vunpack.c.l.b16 %v2940
    %v3044 = vunpack.c.l.b16 %v2941
    %v3045 = vunpack.c.l.b16 %v2942
    %v3046 = vunpack.c.l.b16 %v2943
    %v3047 = vunpack.c.l.b16 %v2944
    %v3048 = vunpack.c.l.b16 %v2945
    %v3049 = vunpack.c.l.b16 %v2946
    %v3050 = vunpack.c.l.b16 %v2947
    %v3051 = vunpack.c.l.b16 %v2948
    %v3052 = vunpack.c.l.b16 %v2949
    %v3053 = vunpack.c.l.b16 %v2950
    %v3054 = vunpack.c.l.b16 %v2951
    %v3055 = vunpack.c.l.b16 %v2952
    %v3056 = vunpack.c.l.b16 %v2953
    %v3057 = vunpack.c.l.b16 %v2954
    %v3058 = vunpack.c.l.b16 %v2955
    %v3059 = vunpack.c.l.b16 %v2956
    %v3060 = vunpack.c.l.b16 %v2957
    %v3061 = vpack.c.b16 %v3014, %v3013
    %v3062 = vpack.c.b16 %v3016, %v3015
    %v3063 = vpack.c.b16 %v3018, %v3017
    %v3064 = vpack.c.b16 %v3020, %v3019
    %v3065 = vpack.c.b16 %v3022, %v3021
    %v3066 = vpack.c.b16 %v3024, %v3023
    %v3067 = vpack.c.b16 %v3026, %v3025
    %v3068 = vpack.c.b16 %v3028, %v3027
    %v3069 = vpack.c.b16 %v3030, %v3029
    %v3070 = vpack.c.b16 %v3032, %v3031
    %v3071 = vpack.c.b16 %v3034, %v3033
    %v3072 = vpack.c.b16 %v3036, %v3035
    %v3073 = vpack.c.b16 %v3038, %v3037
    %v3074 = vpack.c.b16 %v3040, %v3039
    %v3075 = vpack.c.b16 %v3042, %v3041
    %v3076 = vpack.c.b16 %v3044, %v3043
    %v3077 = vpack.c.b16 %v3046, %v3045
    %v3078 = vpack.c.b16 %v3048, %v3047
    %v3079 = vpack.c.b16 %v3050, %v3049
    %v3080 = vpack.c.b16 %v3052, %v3051
    %v3081 = vpack.c.b16 %v3054, %v3053
    %v3082 = vpack.c.b16 %v3056, %v3055
    %v3083 = vpack.c.b16 %v3058, %v3057
    %v3084 = vpack.c.b16 %v3060, %v3059
    %3109 = vmatprep.subr.bf16.mxu0 0
    %3110 = vmatpush1.bf16.msra.mxu0 %v3061
    %3111 = vmatprep.subr.bf16.mxu0 0
    %3112 = vmatpush1.bf16.msra.mxu0 %v3062
    %3113 = vmatprep.subr.bf16.mxu0 0
    %3114 = vmatpush1.bf16.msra.mxu0 %v3063
    %3115 = vmatprep.subr.bf16.mxu0 0
    %3116 = vmatpush1.bf16.msra.mxu0 %v3064
    %3117 = vmatprep.subr.bf16.mxu0 0
    %3118 = vmatpush1.bf16.msra.mxu0 %v3065
    %3119 = vmatprep.subr.bf16.mxu0 0
    %3120 = vmatpush1.bf16.msra.mxu0 %v3066
    %3121 = vmatprep.subr.bf16.mxu0 0
    %3122 = vmatpush1.bf16.msra.mxu0 %v3067
    %3123 = vmatprep.subr.bf16.mxu0 0
    %3124 = vmatpush1.bf16.msra.mxu0 %v3068
    %3125 = vmatprep.subr.bf16.mxu0 0
    %3126 = vmatpush1.bf16.msra.mxu0 %v3069
    %3127 = vmatprep.subr.bf16.mxu0 0
    %3128 = vmatpush1.bf16.msra.mxu0 %v3070
    %3129 = vmatprep.subr.bf16.mxu0 0
    %3130 = vmatpush1.bf16.msra.mxu0 %v3071
    %3131 = vmatprep.subr.bf16.mxu0 0
    %3132 = vmatpush1.bf16.msra.mxu0 %v3072
    %3133 = vmatprep.subr.bf16.mxu0 0
    %3134 = vmatpush1.bf16.msra.mxu0 %v3073
    %3135 = vmatprep.subr.bf16.mxu0 0
    %3136 = vmatpush1.bf16.msra.mxu0 %v3074
    %3137 = vmatprep.subr.bf16.mxu0 0
    %3138 = vmatpush1.bf16.msra.mxu0 %v3075
    %3139 = vmatprep.subr.bf16.mxu0 0
    %3140 = vmatpush1.bf16.msra.mxu0 %v3076
    %3141 = vmatprep.mubr.bf16.mxu0 %v2908
    %3142 = vmatmul.mubr.bf16.gmra.mrb[0].mxu0 %v2907
    %v3143 = vpop.f32.mrb[0].mxu0
    %v3144 = vadd.f32 %v2963, %v3143
    %v3145 = vpop.f32.mrb[0].mxu0
    %v3146 = vpop.f32.mrb[0].mxu0
    %v3147 = vpop.f32.mrb[0].mxu0
    %3148 = vdwg.mxu0
    %3149 = vmatprep.subr.bf16.mxu0 0
    %3150 = vmatpush1.bf16.msra.mxu0 %v3077
    %3151 = vmatprep.subr.bf16.mxu0 0
    %3152 = vmatpush1.bf16.msra.mxu0 %v3078
    %3153 = vmatprep.subr.bf16.mxu0 0
    %3154 = vmatpush1.bf16.msra.mxu0 %v3079
    %3155 = vmatprep.subr.bf16.mxu0 0
    %3156 = vmatpush1.bf16.msra.mxu0 %v3080
    %3157 = vmatprep.subr.bf16.mxu0 0
    %3158 = vmatpush1.bf16.msra.mxu0 %v3081
    %3159 = vmatprep.subr.bf16.mxu0 0
    %3160 = vmatpush1.bf16.msra.mxu0 %v3082
    %3161 = vmatprep.subr.bf16.mxu0 0
    %3162 = vmatpush1.bf16.msra.mxu0 %v3083
    %3163 = vmatprep.subr.bf16.mxu0 0
    %3164 = vmatpush1.bf16.msra.mxu0 %v3084
    %3165 = vmatprep.subr.bf16.mxu0 0
    %3166 = vmatpush1.bf16.msra.mxu0 0
    %3167 = vmatprep.subr.bf16.mxu0 0
    %3168 = vmatpush1.bf16.msra.mxu0 0
    %3169 = vmatprep.subr.bf16.mxu0 0
    %3170 = vmatpush1.bf16.msra.mxu0 0
    %3171 = vmatprep.subr.bf16.mxu0 0
    %3172 = vmatpush1.bf16.msra.mxu0 0
    %3173 = vmatprep.subr.bf16.mxu0 0
    %3174 = vmatpush1.bf16.msra.mxu0 0
    %3175 = vmatprep.subr.bf16.mxu0 0
    %3176 = vmatpush1.bf16.msra.mxu0 0
    %3177 = vmatprep.subr.bf16.mxu0 0
    %3178 = vmatpush1.bf16.msra.mxu0 0
    %3179 = vmatprep.subr.bf16.mxu0 0
    %3180 = vmatpush1.bf16.msra.mxu0 0
    %3181 = vmatprep.mubr.bf16.mxu0 0
    %3182 = vmatmul.mubr.bf16.gmra.mrb[0].mxu0 %v2909
    %v3183 = vpop.f32.mrb[0].mxu0
    %v3184 = vadd.f32 %v3144, %v3183
    %v3185 = vpop.f32.mrb[0].mxu0
    %v3186 = vpop.f32.mrb[0].mxu0
    %v3187 = vpop.f32.mrb[0].mxu0
    %3188 = vdwg.mxu0
    %s3189 = sld [smem:[#allocation2]]
    %v3190 = vtanh.pop %v3184
    %v3191 = vstv %s3189
    %v3192 = vmul.f32 %v3191, %v3190
    %3193 = vst [vmem:[#allocation11] sm:$0xff] %v3192
    // Predicated region
    $region50: #{tpu_custom_call.1} parent=1 // pred_check
      _
    $region51: #{tpu_custom_call.1} parent=1 // pred_check_branch
      %3195 = sbr.rel (0) target = $region53
    $region52: #{tpu_custom_call.1} parent=1 // pred_region
      %s3197 = ssub.s32 128, 32
      %3198 = vsyncadd [#allocation5], %s3197
      %s3199 = sshll.u32 [#allocation11], 4
      %s3200 = int_to_ptr.vmem [resolvable:$true] %s3199
      %3205 = dma.vmem_to_hbm [thread:$0]  %s3200, 32, %s8, [#allocation5], 32, 32, 2
    $region53: #{tpu_custom_call.1} parent=1 // pred_fallthru
      _
    // Predicated region
    $region54: #{tpu_custom_call.1} parent=1 // pred_check
      _
    $region55: #{tpu_custom_call.1} parent=1 // pred_check_branch
      %3207 = sbr.rel (0) target = $region57
    $region56: #{tpu_custom_call.1} parent=1 // pred_region
      %3208 = dma.done [#allocation5], 128
    $region57: #{tpu_custom_call.1} parent=1 // pred_fallthru
      _
    %3209 = vsyncpa [#allocation4], 1
    %3210 = vsyncpa [#allocation7], 1
    %3211 = vsyncpa [#allocation10], 1
    %3212 = vsyncpa [#allocation5], 1

</llo_original>
